<compile_context>
chip_gen: v5e
topology: v5e:2x2
jax: 0.10.0
libtpu: 0.0.40
codegen_flags: <defaults>
</compile_context>

<pallas_src>
import functools

import numpy as np
import jax
import jax.numpy as jnp
from jax.experimental import pallas as pl
from jax.experimental.pallas import tpu as pltpu


_PAD = 128  # lane padding for conv taps (multiple of 128 -> aligned store)


# ----------------------------------------------------------------------------
# Kernel 1: fused per-branch 1x1 conv (+folded BN) and 3x3 conv (+bias)
# ----------------------------------------------------------------------------
def _branch_kernel(x_ref, w1_ref, shift_ref, w4_ref, b4_ref, mask_ref,
                   fea_ref, edge_ref, buf_ref, *, H, W):
    """Channel-major fused branch.

    x_ref    : (1, Cin, H*W)       input activations (flattened NCHW)
    w1_ref   : (mid, Cin)          1x1 conv weight with BN scale folded in
    shift_ref: (mid, 1)            folded BN shift
    w4_ref   : (Cout, 9*mid)       3x3 conv weight, tap-major [ky,kx,ci]
    b4_ref   : (Cout, 1)           3x3 conv bias
    mask_ref : (9, H*W)            per-tap validity mask (zero at borders)
    fea_ref  : (1, mid, H*W)       output: 1x1+BN feature
    edge_ref : (1, Cout, H*W)      output: 3x3 conv result
    buf_ref  : (mid, H*W + 2*_PAD) VMEM scratch (zero-padded feature row)
    """
    HW = H * W
    x = x_ref[0]                                                # (Cin, HW)
    fea = jnp.dot(w1_ref[...], x, preferred_element_type=jnp.float32)
    fea = fea + shift_ref[...]                                  # (mid, HW)
    fea_ref[0] = fea.astype(fea_ref.dtype)

    # Zero-padded copy so every conv tap is a plain lane-shifted load.
    buf_ref[...] = jnp.zeros_like(buf_ref)
    buf_ref[:, _PAD:_PAD + HW] = fea

    taps = []
    t = 0
    for dy in (-1, 0, 1):
        for dx in (-1, 0, 1):
            off = dy * W + dx
            tap = buf_ref[:, _PAD + off:_PAD + off + HW]        # (mid, HW)
            taps.append(tap * mask_ref[t:t + 1, :])
            t += 1
    im2col = jnp.concatenate(taps, axis=0)                      # (9*mid, HW)
    edge = jnp.dot(w4_ref[...], im2col,
                   preferred_element_type=jnp.float32) + b4_ref[...]
    edge_ref[0] = edge.astype(edge_ref.dtype)


def fused_branch(x_cm, w1, shift, w4, b4, masks, H, W):
    """x_cm: (N, Cin, H*W) -> (fea (N, mid, H*W), edge (N, Cout, H*W))."""
    N, Cin, HW = x_cm.shape
    mid = w1.shape[0]
    Cout = w4.shape[0]
    kern = functools.partial(_branch_kernel, H=H, W=W)
    return pl.pallas_call(
        kern,
        out_shape=(jax.ShapeDtypeStruct((N, mid, HW), x_cm.dtype),
                   jax.ShapeDtypeStruct((N, Cout, HW), x_cm.dtype)),
        grid_spec=pltpu.PrefetchScalarGridSpec(
            num_scalar_prefetch=0,
            grid=(N,),
            in_specs=[
                pl.BlockSpec((1, Cin, HW), lambda n: (n, 0, 0)),
                pl.BlockSpec((mid, Cin), lambda n: (0, 0)),
                pl.BlockSpec((mid, 1), lambda n: (0, 0)),
                pl.BlockSpec((Cout, 9 * mid), lambda n: (0, 0)),
                pl.BlockSpec((Cout, 1), lambda n: (0, 0)),
                pl.BlockSpec((9, HW), lambda n: (0, 0)),
            ],
            out_specs=(
                pl.BlockSpec((1, mid, HW), lambda n: (n, 0, 0)),
                pl.BlockSpec((1, Cout, HW), lambda n: (n, 0, 0)),
            ),
            scratch_shapes=[pltpu.VMEM((mid, HW + 2 * _PAD), jnp.float32)],
        ),
        compiler_params=pltpu.CompilerParams(
            dimension_semantics=("parallel",)),
    )(x_cm, w1, shift, w4, b4, masks)


# ----------------------------------------------------------------------------
# Kernel 2: fused epilogue — 4 bilinear resizes + channel concat + 1x1 conv5
# ----------------------------------------------------------------------------
def _epilogue_kernel(e1_ref, e2_ref, e3_ref, f1_ref, f2_ref, f3_ref,
                     r2_ref, r3_ref, w5_ref, b5_ref, edge_ref, fea_ref):
    r2 = r2_ref[...]                        # (HW2, HW1) resize matrix (kron^T)
    r3 = r3_ref[...]                        # (HW3, HW1)

    e2r = jnp.dot(e2_ref[0], r2, preferred_element_type=jnp.float32)
    e3r = jnp.dot(e3_ref[0], r3, preferred_element_type=jnp.float32)
    f2r = jnp.dot(f2_ref[0], r2, preferred_element_type=jnp.float32)
    f3r = jnp.dot(f3_ref[0], r3, preferred_element_type=jnp.float32)

    fea_cat = jnp.concatenate(
        [f1_ref[0].astype(jnp.float32), f2r, f3r], axis=0)      # (3*mid, HW1)
    fea_ref[0] = fea_cat.astype(fea_ref.dtype)

    w5 = w5_ref[...]                                            # (Cout, 3*Cout)
    co = edge_ref.shape[1]
    edge = (jnp.dot(w5[:, 0:co], e1_ref[0].astype(jnp.float32),
                    preferred_element_type=jnp.float32)
            + jnp.dot(w5[:, co:2 * co], e2r,
                      preferred_element_type=jnp.float32)
            + jnp.dot(w5[:, 2 * co:3 * co], e3r,
                      preferred_element_type=jnp.float32)
            + b5_ref[...])
    edge_ref[0] = edge.astype(edge_ref.dtype)


def fused_epilogue(e1, e2, e3, f1, f2, f3, r2, r3, w5, b5):
    N, Cout, HW1 = e1.shape
    mid = f1.shape[1]
    HW2 = e2.shape[2]
    HW3 = e3.shape[2]
    return pl.pallas_call(
        _epilogue_kernel,
        out_shape=(jax.ShapeDtypeStruct((N, Cout, HW1), e1.dtype),
                   jax.ShapeDtypeStruct((N, 3 * mid, HW1), f1.dtype)),
        grid_spec=pltpu.PrefetchScalarGridSpec(
            num_scalar_prefetch=0,
            grid=(N,),
            in_specs=[
                pl.BlockSpec((1, Cout, HW1), lambda n: (n, 0, 0)),
                pl.BlockSpec((1, Cout, HW2), lambda n: (n, 0, 0)),
                pl.BlockSpec((1, Cout, HW3), lambda n: (n, 0, 0)),
                pl.BlockSpec((1, mid, HW1), lambda n: (n, 0, 0)),
                pl.BlockSpec((1, mid, HW2), lambda n: (n, 0, 0)),
                pl.BlockSpec((1, mid, HW3), lambda n: (n, 0, 0)),
                pl.BlockSpec((HW2, HW1), lambda n: (0, 0)),
                pl.BlockSpec((HW3, HW1), lambda n: (0, 0)),
                pl.BlockSpec((Cout, 3 * Cout), lambda n: (0, 0)),
                pl.BlockSpec((Cout, 1), lambda n: (0, 0)),
            ],
            out_specs=(
                pl.BlockSpec((1, Cout, HW1), lambda n: (n, 0, 0)),
                pl.BlockSpec((1, 3 * mid, HW1), lambda n: (n, 0, 0)),
            ),
        ),
        compiler_params=pltpu.CompilerParams(
            dimension_semantics=("parallel",)),
    )(e1, e2, e3, f1, f2, f3, r2, r3, w5, b5)


# ----------------------------------------------------------------------------
# Host-side constant builders (masks, interpolation matrices)
# ----------------------------------------------------------------------------
def _conv3x3_masks(H, W):
    """(9, H*W) float mask: 1 where the shifted tap is inside the image."""
    ys, xs = np.divmod(np.arange(H * W), W)
    masks = np.zeros((9, H * W), np.float32)
    t = 0
    for dy in (-1, 0, 1):
        for dx in (-1, 0, 1):
            valid = ((ys + dy >= 0) & (ys + dy < H) &
                     (xs + dx >= 0) & (xs + dx < W))
            masks[t] = valid.astype(np.float32)
            t += 1
    return masks


def _interp_matrix(out_size, in_size):
    w = np.zeros((out_size, in_size), np.float32)
    if out_size == 1:
        src = np.zeros((1,), np.float64)
    else:
        src = np.arange(out_size, dtype=np.float64) * (in_size - 1) / (out_size - 1)
    i0 = np.clip(np.floor(src).astype(np.int64), 0, in_size - 1)
    i1 = np.minimum(i0 + 1, in_size - 1)
    f = (src - i0).astype(np.float32)
    rows = np.arange(out_size)
    w[rows, i0] += (1.0 - f)
    w[rows, i1] += f
    return w


def _resize_matrix_T(Hin, Win, Hout, Wout):
    """(Hin*Win, Hout*Wout): bilinear align_corners=True, out = x @ RT."""
    wy = _interp_matrix(Hout, Hin)
    wx = _interp_matrix(Wout, Win)
    return jnp.asarray(np.kron(wy, wx).T, jnp.float32)


# ----------------------------------------------------------------------------
# Edge_Module parameters (deterministic, synthetic) + forward
# ----------------------------------------------------------------------------
def init_params(key, in_fea=(32, 64, 128), mid_fea=32, out_fea=2, eps=1e-5):
    ks = iter(jax.random.split(key, 32))
    params = {}
    for i, cin in enumerate(in_fea, start=1):
        w = 0.05 * jax.random.normal(next(ks), (cin, mid_fea), jnp.float32)
        gamma = 1.0 + 0.1 * jax.random.normal(next(ks), (mid_fea,), jnp.float32)
        beta = 0.1 * jax.random.normal(next(ks), (mid_fea,), jnp.float32)
        rmean = 0.1 * jax.random.normal(next(ks), (mid_fea,), jnp.float32)
        rvar = 1.0 + 0.1 * jnp.abs(jax.random.normal(next(ks), (mid_fea,), jnp.float32))
        scale = gamma / jnp.sqrt(rvar + eps)          # folded BN (inference)
        shift = beta - rmean * scale
        params[f"conv{i}"] = (w, scale.reshape(1, -1), shift.reshape(1, -1))
    params["conv4_w"] = 0.05 * jax.random.normal(next(ks), (9, mid_fea, out_fea), jnp.float32)
    params["conv4_b"] = 0.1 * jax.random.normal(next(ks), (1, out_fea), jnp.float32)
    params["conv5_w"] = 0.1 * jax.random.normal(next(ks), (out_fea * 3, out_fea), jnp.float32)
    params["conv5_b"] = 0.1 * jax.random.normal(next(ks), (1, out_fea), jnp.float32)
    return params


def edge_module_forward(params, x1, x2, x3):
    """x1/x2/x3 in NCHW (PyTorch convention). Returns (edge, edge_fea) NCHW."""
    N, _, h, w = x1.shape
    mid = params["conv1"][0].shape[1]
    cout = params["conv4_w"].shape[2]

    # Channel-major weight prep (BN scale folded into the 1x1 weights).
    def prep1x1(key):
        wc, scale, shift = params[key]                  # (Cin,mid),(1,mid),(1,mid)
        return (wc * scale).T, shift.reshape(-1, 1)     # (mid,Cin), (mid,1)

    w1_1, sh1 = prep1x1("conv1")
    w1_2, sh2 = prep1x1("conv2")
    w1_3, sh3 = prep1x1("conv3")
    w4 = jnp.transpose(params["conv4_w"], (2, 0, 1)).reshape(cout, 9 * mid)
    b4 = params["conv4_b"].reshape(-1, 1)
    w5 = params["conv5_w"].T                            # (cout, 3*cout)
    b5 = params["conv5_b"].reshape(-1, 1)

    def branch(x, w1, sh):
        Nn, Cin, H, W = x.shape
        masks = jnp.asarray(_conv3x3_masks(H, W))
        fea, edge = fused_branch(x.reshape(Nn, Cin, H * W), w1, sh, w4, b4,
                                 masks, H, W)
        return fea, edge, H, W

    f1, e1, _, _ = branch(x1, w1_1, sh1)
    f2, e2, H2, W2 = branch(x2, w1_2, sh2)
    f3, e3, H3, W3 = branch(x3, w1_3, sh3)

    r2 = _resize_matrix_T(H2, W2, h, w)
    r3 = _resize_matrix_T(H3, W3, h, w)

    edge, fea = fused_epilogue(e1, e2, e3, f1, f2, f3, r2, r3, w5, b5)
    return edge.reshape(N, cout, h, w), fea.reshape(N, 3 * mid, h, w)


# ----------------------------------------------------------------------------
# Pure-JAX reference (independent of the Pallas kernels) for verification
# ----------------------------------------------------------------------------
def _to_nhwc(x):
    return jnp.transpose(x, (0, 2, 3, 1))


def _to_nchw(x):
    return jnp.transpose(x, (0, 3, 1, 2))


def reference_forward(params, x1, x2, x3):
    hi = jax.lax.Precision.HIGHEST

    def ref_branch(x, key):
        wconv, scale, shift = params[key]
        xn = _to_nhwc(x)
        fea = (jnp.einsum("nhwc,cm->nhwm", xn, wconv, precision=hi)
               * scale.reshape(1, 1, 1, -1) + shift.reshape(1, 1, 1, -1))
        w9 = params["conv4_w"]
        cin, cout = w9.shape[1], w9.shape[2]
        whwio = w9.reshape(3, 3, cin, cout)
        edge = jax.lax.conv_general_dilated(
            fea, whwio, (1, 1), ((1, 1), (1, 1)),
            dimension_numbers=("NHWC", "HWIO", "NHWC"), precision=hi)
        edge = edge + params["conv4_b"].reshape(1, 1, 1, -1)
        return fea, edge

    def ref_bilinear(xn, Hout, Wout):
        _, Hin, Win, _ = xn.shape

        def coords(out_s, in_s):
            if out_s == 1:
                s = jnp.zeros((out_s,), jnp.float32)
            else:
                s = jnp.arange(out_s, dtype=jnp.float32) * ((in_s - 1) / (out_s - 1))
            i0 = jnp.clip(jnp.floor(s).astype(jnp.int32), 0, in_s - 1)
            i1 = jnp.minimum(i0 + 1, in_s - 1)
            f = s - i0.astype(jnp.float32)
            return i0, i1, f

        y0, y1, fy = coords(Hout, Hin)
        x0, x1i, fx = coords(Wout, Win)
        fy_ = fy[None, :, None, None]
        fx_ = fx[None, None, :, None]

        def gat(r, c):
            return xn[:, r][:, :, c]

        top = gat(y0, x0) * (1 - fx_) + gat(y0, x1i) * fx_
        bot = gat(y1, x0) * (1 - fx_) + gat(y1, x1i) * fx_
        return top * (1 - fy_) + bot * fy_

    _, _, h, w = x1.shape
    f1, e1 = ref_branch(x1, "conv1")
    f2, e2 = ref_branch(x2, "conv2")
    f3, e3 = ref_branch(x3, "conv3")
    f2 = ref_bilinear(f2, h, w)
    f3 = ref_bilinear(f3, h, w)
    e2 = ref_bilinear(e2, h, w)
    e3 = ref_bilinear(e3, h, w)
    edge = jnp.concatenate([e1, e2, e3], axis=-1)
    fea = jnp.concatenate([f1, f2, f3], axis=-1)
    edge = (jnp.einsum("nhwc,cm->nhwm", edge, params["conv5_w"], precision=hi)
            + params["conv5_b"].reshape(1, 1, 1, -1))
    return _to_nchw(edge), _to_nchw(fea)


# ----------------------------------------------------------------------------
if __name__ == "__main__":
    key = jax.random.PRNGKey(0)
    kp, k1, k2, k3 = jax.random.split(key, 4)
    params = init_params(kp, in_fea=(32, 64, 128), mid_fea=32, out_fea=2)

    # Small NCHW inputs consistent with Edge_Module(in_fea=[32,64,128], mid_fea=32)
    x1 = jax.random.normal(k1, (2, 32, 16, 16), jnp.float32)
    x2 = jax.random.normal(k2, (2, 64, 8, 8), jnp.float32)
    x3 = jax.random.normal(k3, (2, 128, 8, 8), jnp.float32)

    edge, edge_fea = edge_module_forward(params, x1, x2, x3)
    edge = jax.block_until_ready(edge)
    edge_fea = jax.block_until_ready(edge_fea)

    r_edge, r_fea = reference_forward(params, x1, x2, x3)
    np.testing.assert_allclose(np.asarray(edge), np.asarray(r_edge),
                               rtol=1e-2, atol=1e-2)
    np.testing.assert_allclose(np.asarray(edge_fea), np.asarray(r_fea),
                               rtol=1e-2, atol=1e-2)

    print("KERNEL_OK")
</pallas_src>

<mosaic_0001>
module attributes {stable_mosaic.version = 11 : i64} {
  func.func @_branch_kernel(%arg0: i32, %arg1: memref<1x32x256xf32, #tpu.memory_space<vmem>>, %arg2: memref<32x32xf32, #tpu.memory_space<vmem>>, %arg3: memref<32x1xf32, #tpu.memory_space<vmem>>, %arg4: memref<2x288xf32, #tpu.memory_space<vmem>>, %arg5: memref<2x1xf32, #tpu.memory_space<vmem>>, %arg6: memref<9x256xf32, #tpu.memory_space<vmem>>, %arg7: memref<1x32x256xf32, #tpu.memory_space<vmem>>, %arg8: memref<1x2x256xf32, #tpu.memory_space<vmem>>, %arg9: memref<32x512xf32, #tpu.memory_space<vmem>>) attributes {dimension_semantics = [#tpu.dimension_semantics<parallel>], iteration_bounds = array<i64: 2>, scalar_prefetch = 0 : i64, scratch_operands = 1 : i64, tpu.core_type = #tpu.core_type<tc>, window_params = [{transform_indices = @transform_0, window_bounds = array<i64: 1, 32, 256>}, {pipeline_mode = #tpu.pipeline_mode<synchronous>, transform_indices = @transform_1, window_bounds = array<i64: 32, 32>}, {pipeline_mode = #tpu.pipeline_mode<synchronous>, transform_indices = @transform_2, window_bounds = array<i64: 32, 1>}, {pipeline_mode = #tpu.pipeline_mode<synchronous>, transform_indices = @transform_3, window_bounds = array<i64: 2, 288>}, {pipeline_mode = #tpu.pipeline_mode<synchronous>, transform_indices = @transform_4, window_bounds = array<i64: 2, 1>}, {pipeline_mode = #tpu.pipeline_mode<synchronous>, transform_indices = @transform_5, window_bounds = array<i64: 9, 256>}, {transform_indices = @transform_6, window_bounds = array<i64: 1, 32, 256>}, {transform_indices = @transform_7, window_bounds = array<i64: 1, 2, 256>}]} {
    %c0 = arith.constant 0 : index
    %c0_0 = arith.constant 0 : index
    %c0_1 = arith.constant 0 : index
    %0 = vector.load %arg1[%c0, %c0_0, %c0_1] : memref<1x32x256xf32, #tpu.memory_space<vmem>>, vector<1x32x256xf32>
    %1 = vector.shape_cast %0 : vector<1x32x256xf32> to vector<32x256xf32>
    %c0_2 = arith.constant 0 : index
    %c0_3 = arith.constant 0 : index
    %2 = vector.load %arg2[%c0_2, %c0_3] : memref<32x32xf32, #tpu.memory_space<vmem>>, vector<32x32xf32>
    %cst = arith.constant dense<0.000000e+00> : vector<32x256xf32>
    %3 = tpu.matmul %2, %1, %cst {dimension_numbers = #tpu.dot_dimension_numbers<[1], [0], [0], [1], [0, 0, 1, 1], [], []>} : vector<32x32xf32>, vector<32x256xf32>, vector<32x256xf32> -> vector<32x256xf32>
    %c0_4 = arith.constant 0 : index
    %c0_5 = arith.constant 0 : index
    %4 = vector.load %arg3[%c0_4, %c0_5] : memref<32x1xf32, #tpu.memory_space<vmem>>, vector<32x1xf32>
    %5 = vector.broadcast %4 : vector<32x1xf32> to vector<32x256xf32>
    %6 = arith.addf %3, %5 : vector<32x256xf32>
    %c0_6 = arith.constant 0 : index
    %c0_7 = arith.constant 0 : index
    %c0_8 = arith.constant 0 : index
    %7 = vector.load %arg7[%c0_6, %c0_7, %c0_8] : memref<1x32x256xf32, #tpu.memory_space<vmem>>, vector<1x32x256xf32>
    %8 = vector.shape_cast %7 : vector<1x32x256xf32> to vector<32x256xf32>
    %9 = vector.shape_cast %6 : vector<32x256xf32> to vector<1x32x256xf32>
    tpu.vector_store %arg7[%c0_6, %c0_7, %c0_8], %9 {strides = array<i32>} : memref<1x32x256xf32, #tpu.memory_space<vmem>>, vector<1x32x256xf32>,
    %cst_9 = arith.constant 0.000000e+00 : f32
    %10 = vector.broadcast %cst_9 : f32 to vector<32x512xf32>
    %c0_10 = arith.constant 0 : index
    %c0_11 = arith.constant 0 : index
    %11 = vector.load %arg9[%c0_10, %c0_11] : memref<32x512xf32, #tpu.memory_space<vmem>>, vector<32x512xf32>
    tpu.vector_store %arg9[%c0_10, %c0_11], %10 {strides = array<i32>} : memref<32x512xf32, #tpu.memory_space<vmem>>, vector<32x512xf32>,
    %c0_12 = arith.constant 0 : index
    %c128 = arith.constant 128 : index
    %12 = vector.load %arg9[%c0_12, %c128] : memref<32x512xf32, #tpu.memory_space<vmem>>, vector<32x256xf32>
    tpu.vector_store %arg9[%c0_12, %c128], %6 {strides = array<i32>} : memref<32x512xf32, #tpu.memory_space<vmem>>, vector<32x256xf32>,
    %c0_13 = arith.constant 0 : index
    %c111 = arith.constant 111 : index
    %13 = vector.load %arg9[%c0_13, %c111] : memref<32x512xf32, #tpu.memory_space<vmem>>, vector<32x256xf32>
    %c0_14 = arith.constant 0 : index
    %c0_15 = arith.constant 0 : index
    %14 = vector.load %arg6[%c0_14, %c0_15] : memref<9x256xf32, #tpu.memory_space<vmem>>, vector<1x256xf32>
    %15 = vector.broadcast %14 : vector<1x256xf32> to vector<32x256xf32>
    %16 = arith.mulf %13, %15 : vector<32x256xf32>
    %c0_16 = arith.constant 0 : index
    %c112 = arith.constant 112 : index
    %17 = vector.load %arg9[%c0_16, %c112] : memref<32x512xf32, #tpu.memory_space<vmem>>, vector<32x256xf32>
    %c1 = arith.constant 1 : index
    %c0_17 = arith.constant 0 : index
    %18 = vector.load %arg6[%c1, %c0_17] : memref<9x256xf32, #tpu.memory_space<vmem>>, vector<1x256xf32>
    %19 = vector.broadcast %18 : vector<1x256xf32> to vector<32x256xf32>
    %20 = arith.mulf %17, %19 : vector<32x256xf32>
    %c0_18 = arith.constant 0 : index
    %c113 = arith.constant 113 : index
    %21 = vector.load %arg9[%c0_18, %c113] : memref<32x512xf32, #tpu.memory_space<vmem>>, vector<32x256xf32>
    %c2 = arith.constant 2 : index
    %c0_19 = arith.constant 0 : index
    %22 = vector.load %arg6[%c2, %c0_19] : memref<9x256xf32, #tpu.memory_space<vmem>>, vector<1x256xf32>
    %23 = vector.broadcast %22 : vector<1x256xf32> to vector<32x256xf32>
    %24 = arith.mulf %21, %23 : vector<32x256xf32>
    %c0_20 = arith.constant 0 : index
    %c127 = arith.constant 127 : index
    %25 = vector.load %arg9[%c0_20, %c127] : memref<32x512xf32, #tpu.memory_space<vmem>>, vector<32x256xf32>
    %c3 = arith.constant 3 : index
    %c0_21 = arith.constant 0 : index
    %26 = vector.load %arg6[%c3, %c0_21] : memref<9x256xf32, #tpu.memory_space<vmem>>, vector<1x256xf32>
    %27 = vector.broadcast %26 : vector<1x256xf32> to vector<32x256xf32>
    %28 = arith.mulf %25, %27 : vector<32x256xf32>
    %c0_22 = arith.constant 0 : index
    %c128_23 = arith.constant 128 : index
    %29 = vector.load %arg9[%c0_22, %c128_23] : memref<32x512xf32, #tpu.memory_space<vmem>>, vector<32x256xf32>
    %c4 = arith.constant 4 : index
    %c0_24 = arith.constant 0 : index
    %30 = vector.load %arg6[%c4, %c0_24] : memref<9x256xf32, #tpu.memory_space<vmem>>, vector<1x256xf32>
    %31 = vector.broadcast %30 : vector<1x256xf32> to vector<32x256xf32>
    %32 = arith.mulf %29, %31 : vector<32x256xf32>
    %c0_25 = arith.constant 0 : index
    %c129 = arith.constant 129 : index
    %33 = vector.load %arg9[%c0_25, %c129] : memref<32x512xf32, #tpu.memory_space<vmem>>, vector<32x256xf32>
    %c5 = arith.constant 5 : index
    %c0_26 = arith.constant 0 : index
    %34 = vector.load %arg6[%c5, %c0_26] : memref<9x256xf32, #tpu.memory_space<vmem>>, vector<1x256xf32>
    %35 = vector.broadcast %34 : vector<1x256xf32> to vector<32x256xf32>
    %36 = arith.mulf %33, %35 : vector<32x256xf32>
    %c0_27 = arith.constant 0 : index
    %c143 = arith.constant 143 : index
    %37 = vector.load %arg9[%c0_27, %c143] : memref<32x512xf32, #tpu.memory_space<vmem>>, vector<32x256xf32>
    %c6 = arith.constant 6 : index
    %c0_28 = arith.constant 0 : index
    %38 = vector.load %arg6[%c6, %c0_28] : memref<9x256xf32, #tpu.memory_space<vmem>>, vector<1x256xf32>
    %39 = vector.broadcast %38 : vector<1x256xf32> to vector<32x256xf32>
    %40 = arith.mulf %37, %39 : vector<32x256xf32>
    %c0_29 = arith.constant 0 : index
    %c144 = arith.constant 144 : index
    %41 = vector.load %arg9[%c0_29, %c144] : memref<32x512xf32, #tpu.memory_space<vmem>>, vector<32x256xf32>
    %c7 = arith.constant 7 : index
    %c0_30 = arith.constant 0 : index
    %42 = vector.load %arg6[%c7, %c0_30] : memref<9x256xf32, #tpu.memory_space<vmem>>, vector<1x256xf32>
    %43 = vector.broadcast %42 : vector<1x256xf32> to vector<32x256xf32>
    %44 = arith.mulf %41, %43 : vector<32x256xf32>
    %c0_31 = arith.constant 0 : index
    %c145 = arith.constant 145 : index
    %45 = vector.load %arg9[%c0_31, %c145] : memref<32x512xf32, #tpu.memory_space<vmem>>, vector<32x256xf32>
    %c8 = arith.constant 8 : index
    %c0_32 = arith.constant 0 : index
    %46 = vector.load %arg6[%c8, %c0_32] : memref<9x256xf32, #tpu.memory_space<vmem>>, vector<1x256xf32>
    %47 = vector.broadcast %46 : vector<1x256xf32> to vector<32x256xf32>
    %48 = arith.mulf %45, %47 : vector<32x256xf32>
    %49 = tpu.concatenate %16, %20, %24, %28, %32, %36, %40, %44, %48 in 0 : vector<32x256xf32>, vector<32x256xf32>, vector<32x256xf32>, vector<32x256xf32>, vector<32x256xf32>, vector<32x256xf32>, vector<32x256xf32>, vector<32x256xf32>, vector<32x256xf32> -> vector<288x256xf32>
    %c0_33 = arith.constant 0 : index
    %c0_34 = arith.constant 0 : index
    %50 = vector.load %arg4[%c0_33, %c0_34] : memref<2x288xf32, #tpu.memory_space<vmem>>, vector<2x288xf32>
    %cst_35 = arith.constant dense<0.000000e+00> : vector<2x256xf32>
    %51 = tpu.matmul %50, %49, %cst_35 {dimension_numbers = #tpu.dot_dimension_numbers<[1], [0], [0], [1], [0, 0, 1, 1], [], []>} : vector<2x288xf32>, vector<288x256xf32>, vector<2x256xf32> -> vector<2x256xf32>
    %c0_36 = arith.constant 0 : index
    %c0_37 = arith.constant 0 : index
    %52 = vector.load %arg5[%c0_36, %c0_37] : memref<2x1xf32, #tpu.memory_space<vmem>>, vector<2x1xf32>
    %53 = vector.broadcast %52 : vector<2x1xf32> to vector<2x256xf32>
    %54 = arith.addf %51, %53 : vector<2x256xf32>
    %c0_38 = arith.constant 0 : index
    %c0_39 = arith.constant 0 : index
    %c0_40 = arith.constant 0 : index
    %55 = vector.load %arg8[%c0_38, %c0_39, %c0_40] : memref<1x2x256xf32, #tpu.memory_space<vmem>>, vector<1x2x256xf32>
    %56 = vector.shape_cast %55 : vector<1x2x256xf32> to vector<2x256xf32>
    %57 = vector.shape_cast %54 : vector<2x256xf32> to vector<1x2x256xf32>
    tpu.vector_store %arg8[%c0_38, %c0_39, %c0_40], %57 {strides = array<i32>} : memref<1x2x256xf32, #tpu.memory_space<vmem>>, vector<1x2x256xf32>,
    return
  }
  func.func @transform_0(%arg0: i32) -> (i32, i32, i32) {
    %c0_i32 = arith.constant 0 : i32
    %c0_i32_0 = arith.constant 0 : i32
    %c0_i32_1 = arith.constant 0 : i32
    return %arg0, %c0_i32, %c0_i32_0 : i32, i32, i32
  }
  func.func @transform_1(%arg0: i32) -> (i32, i32) {
    %c0_i32 = arith.constant 0 : i32
    %c0_i32_0 = arith.constant 0 : i32
    %c0_i32_1 = arith.constant 0 : i32
    return %c0_i32, %c0_i32_0 : i32, i32
  }
  func.func @transform_2(%arg0: i32) -> (i32, i32) {
    %c0_i32 = arith.constant 0 : i32
    %c0_i32_0 = arith.constant 0 : i32
    %c0_i32_1 = arith.constant 0 : i32
    return %c0_i32, %c0_i32_0 : i32, i32
  }
  func.func @transform_3(%arg0: i32) -> (i32, i32) {
    %c0_i32 = arith.constant 0 : i32
    %c0_i32_0 = arith.constant 0 : i32
    %c0_i32_1 = arith.constant 0 : i32
    return %c0_i32, %c0_i32_0 : i32, i32
  }
  func.func @transform_4(%arg0: i32) -> (i32, i32) {
    %c0_i32 = arith.constant 0 : i32
    %c0_i32_0 = arith.constant 0 : i32
    %c0_i32_1 = arith.constant 0 : i32
    return %c0_i32, %c0_i32_0 : i32, i32
  }
  func.func @transform_5(%arg0: i32) -> (i32, i32) {
    %c0_i32 = arith.constant 0 : i32
    %c0_i32_0 = arith.constant 0 : i32
    %c0_i32_1 = arith.constant 0 : i32
    return %c0_i32, %c0_i32_0 : i32, i32
  }
  func.func @transform_6(%arg0: i32) -> (i32, i32, i32) {
    %c0_i32 = arith.constant 0 : i32
    %c0_i32_0 = arith.constant 0 : i32
    %c0_i32_1 = arith.constant 0 : i32
    return %arg0, %c0_i32, %c0_i32_0 : i32, i32, i32
  }
  func.func @transform_7(%arg0: i32) -> (i32, i32, i32) {
    %c0_i32 = arith.constant 0 : i32
    %c0_i32_0 = arith.constant 0 : i32
    %c0_i32_1 = arith.constant 0 : i32
    return %arg0, %c0_i32, %c0_i32_0 : i32, i32, i32
  }
}

</mosaic_0001>

<llo_original>
// kernel: tpu_custom_call.1
$region0: #{tpu_custom_call.1}
  #allocation0 [shape = 'u32[]', space=smem, size = 0x4, offset = 0x4, fixed_abs, tag = 'smem constant byte address 0x4 - core index']
  #allocation1 [shape = 'u32[72,128]{1,0:T(1,128)}', space=vmem, size = 0x9000, scoped, tag = 'internal scratch']
  #allocation2 [shape = 'f32[32,512]{1,0:T(8,128)}', space=vmem, size = 0x10000, scoped, tag = 'scratch operand']
  %s0 = inlined_call_operand.hbm [shape: f32[2,32,256], index: 0, kind: input, shape index: {}]
  %s1 = inlined_call_operand.vmem [shape: f32[32,32], index: 1, kind: input, shape index: {}]
  %s2 = inlined_call_operand.vmem [shape: f32[32,1], index: 2, kind: input, shape index: {}]
  %s3 = inlined_call_operand.hbm [shape: f32[2,288], index: 3, kind: input, shape index: {}]
  %s4 = inlined_call_operand.vmem [shape: f32[2,1], index: 4, kind: input, shape index: {}]
  %s5 = inlined_call_operand.hbm [shape: f32[9,256], index: 5, kind: input, shape index: {}]
  %s6 = inlined_call_operand.hbm [shape: f32[2,32,256], index: 6, kind: output, shape index: {0}]
  %s7 = inlined_call_operand.hbm [shape: f32[2,2,256], index: 7, kind: output, shape index: {1}]
  %8 = xla_tuple %s6, %s7
  %s9 = sld [smem:[#allocation0]]
  $region77: #{tpu_custom_call.1} parent=0
    _
  %s11 = ssub.s32 1, %s9
  %s12 = scalar_select 0, %s11, %s9
  $region1: #{tpu_custom_call.1} parent=0
    #allocation3 [shape = 'u8[65536]{0}', space=vmem, size = 0x10000, scoped, tag = 'input window, operand 0']
    #allocation4 [shape = 's32[2]{0}', space=sflag, size = 0x8, scoped, tag = 'scoped memory for tpu_custom_call.1']
    #allocation5 [shape = 's32[2]{0}', space=sflag, size = 0x8, scoped, tag = 'scoped memory for tpu_custom_call.1']
    #allocation6 [shape = 'u8[3072]{0}', space=vmem, size = 0xc00, scoped, tag = 'input window, operand 3, single buffered']
    #allocation7 [shape = 's32[1]{0}', space=sflag, size = 0x4, scoped, tag = 'scoped memory for tpu_custom_call.1']
    #allocation8 [shape = 'u8[16384]{0}', space=vmem, size = 0x4000, scoped, tag = 'input window, operand 5, single buffered']
    #allocation9 [shape = 'u8[65536]{0}', space=vmem, size = 0x10000, scoped, tag = 'output window, operand 0']
    #allocation10 [shape = 'u8[4096]{0}', space=vmem, size = 0x1000, scoped, tag = 'output window, operand 1']
    #allocation11 [shape = 's32[2]{0}', space=sflag, size = 0x8, scoped, tag = 'scoped memory for tpu_custom_call.1']
    %13 = vsyncpa [#allocation4], 0
    %s14 = scalar_lea.sflag [#allocation4], 1
    %15 = vsyncpa %s14, 0
    %16 = vsyncpa [#allocation7], 0
    %17 = vsyncpa [#allocation5], 0
    %s18 = scalar_lea.sflag [#allocation5], 1
    %19 = vsyncpa %s18, 0
    %20 = vsyncpa [#allocation11], 0
    %s21 = scalar_lea.sflag [#allocation11], 1
    %22 = vsyncpa %s21, 0
    loop: start=0, step=1, limit=4
    $region2: #{tpu_custom_call.1} parent=1 // loop_pre_header
      _
    $region3: #{tpu_custom_call.1} parent=1 // loop_header
      %s24 = sphi 0, %s28
      %p25 = scmp.ge.s32.totalorder %s24, 4
      %s34 = sphi 0, %s36
      %s37 = sphi 0, %s34
      %s38 = sphi 0, %s37
      %s54 = sphi 0, %s38
      %s58 = sphi 0, %s58
      %s60 = sphi 0, %s58
      %s61 = sphi 0, %s60
      %s75 = sphi 0, %s61
      %s79 = sphi 0, %s79
      %s81 = sphi 0, %s79
      %s82 = sphi 0, %s81
      %s96 = sphi 0, %s82
      %s100 = sphi 0, %s100
      %s102 = sphi 0, %s100
      %s103 = sphi 0, %s102
      %s117 = sphi 0, %s103
      %s121 = sphi 0, %s121
      %s123 = sphi 0, %s121
      %s124 = sphi 0, %s123
      %s138 = sphi 0, %s124
      %s142 = sphi 0, %s142
      %s144 = sphi 0, %s142
      %s145 = sphi 0, %s144
      %s159 = sphi 0, %s145
      %s165 = sphi 0, %s167
      %s168 = sphi 0, %s165
      %s169 = sphi 0, %s168
      %s185 = sphi 0, %s169
      %s191 = sphi 0, %s193
      %s194 = sphi 0, %s191
      %s195 = sphi 0, %s194
      %s211 = sphi 0, %s195
    $region4: #{tpu_custom_call.1} parent=1 // loop_header_branch
      %27 = sbr.rel (%p25) target = $region8
    $region5: #{tpu_custom_call.1} parent=1 // loop_body
      %s29 = ssub.s32 %s24, 1
      %s30 = ssub.s32 %s24, 2
      %s31 = sadd.s32 %s24, 1
      %s32 = ssub.s32 %s24, %s31
      %p33 = scmp.eq.s32.totalorder %s32, 0
      %s35 = sadd.s32 %s34, 1
      %s36 = scalar_select %p33, %s34, %s35
      %p39 = pneg %p33
      %p40 = scmp.eq.s32.totalorder %s24, 1
      %p41 = por %p39, %p40
      %p42 = scmp.ne.s32.totalorder %s34, %s37
      %p43 = scmp.eq.s32.totalorder %s24, 0
      %p44 = por %p42, %p43
      %p45 = scmp.ne.s32.totalorder %s34, %s37
      %p46 = scmp.eq.s32.totalorder %s29, 1
      %p47 = por %p45, %p46
      %p48 = scmp.ne.s32.totalorder %s37, %s38
      %p49 = scmp.eq.s32.totalorder %s29, 0
      %p50 = por %p48, %p49
      %p51 = scmp.ne.s32.totalorder %s37, %s38
      %p52 = scmp.eq.s32.totalorder %s30, 1
      %p53 = por %p51, %p52
      %p55 = scmp.ne.s32.totalorder %s38, %s54
      %p56 = scmp.eq.s32.totalorder %s30, 0
      %p57 = por %p55, %p56
      %s59 = sadd.s32 %s58, 1
      %p62 = scmp.eq.s32.totalorder %s24, 1
      %p63 = scmp.ne.s32.totalorder %s58, %s60
      %p64 = scmp.eq.s32.totalorder %s24, 0
      %p65 = por %p63, %p64
      %p66 = scmp.ne.s32.totalorder %s58, %s60
      %p67 = scmp.eq.s32.totalorder %s29, 1
      %p68 = por %p66, %p67
      %p69 = scmp.ne.s32.totalorder %s60, %s61
      %p70 = scmp.eq.s32.totalorder %s29, 0
      %p71 = por %p69, %p70
      %p72 = scmp.ne.s32.totalorder %s60, %s61
      %p73 = scmp.eq.s32.totalorder %s30, 1
      %p74 = por %p72, %p73
      %p76 = scmp.ne.s32.totalorder %s61, %s75
      %p77 = scmp.eq.s32.totalorder %s30, 0
      %p78 = por %p76, %p77
      %s80 = sadd.s32 %s79, 1
      %p83 = scmp.eq.s32.totalorder %s24, 1
      %p84 = scmp.ne.s32.totalorder %s79, %s81
      %p85 = scmp.eq.s32.totalorder %s24, 0
      %p86 = por %p84, %p85
      %p87 = scmp.ne.s32.totalorder %s79, %s81
      %p88 = scmp.eq.s32.totalorder %s29, 1
      %p89 = por %p87, %p88
      %p90 = scmp.ne.s32.totalorder %s81, %s82
      %p91 = scmp.eq.s32.totalorder %s29, 0
      %p92 = por %p90, %p91
      %p93 = scmp.ne.s32.totalorder %s81, %s82
      %p94 = scmp.eq.s32.totalorder %s30, 1
      %p95 = por %p93, %p94
      %p97 = scmp.ne.s32.totalorder %s82, %s96
      %p98 = scmp.eq.s32.totalorder %s30, 0
      %p99 = por %p97, %p98
      %s101 = sadd.s32 %s100, 1
      %p104 = scmp.eq.s32.totalorder %s24, 1
      %p105 = scmp.ne.s32.totalorder %s100, %s102
      %p106 = scmp.eq.s32.totalorder %s24, 0
      %p107 = por %p105, %p106
      %p108 = scmp.ne.s32.totalorder %s100, %s102
      %p109 = scmp.eq.s32.totalorder %s29, 1
      %p110 = por %p108, %p109
      %p111 = scmp.ne.s32.totalorder %s102, %s103
      %p112 = scmp.eq.s32.totalorder %s29, 0
      %p113 = por %p111, %p112
      %p114 = scmp.ne.s32.totalorder %s102, %s103
      %p115 = scmp.eq.s32.totalorder %s30, 1
      %p116 = por %p114, %p115
      %p118 = scmp.ne.s32.totalorder %s103, %s117
      %p119 = scmp.eq.s32.totalorder %s30, 0
      %p120 = por %p118, %p119
      %s122 = sadd.s32 %s121, 1
      %p125 = scmp.eq.s32.totalorder %s24, 1
      %p126 = scmp.ne.s32.totalorder %s121, %s123
      %p127 = scmp.eq.s32.totalorder %s24, 0
      %p128 = por %p126, %p127
      %p129 = scmp.ne.s32.totalorder %s121, %s123
      %p130 = scmp.eq.s32.totalorder %s29, 1
      %p131 = por %p129, %p130
      %p132 = scmp.ne.s32.totalorder %s123, %s124
      %p133 = scmp.eq.s32.totalorder %s29, 0
      %p134 = por %p132, %p133
      %p135 = scmp.ne.s32.totalorder %s123, %s124
      %p136 = scmp.eq.s32.totalorder %s30, 1
      %p137 = por %p135, %p136
      %p139 = scmp.ne.s32.totalorder %s124, %s138
      %p140 = scmp.eq.s32.totalorder %s30, 0
      %p141 = por %p139, %p140
      %s143 = sadd.s32 %s142, 1
      %p146 = scmp.eq.s32.totalorder %s24, 1
      %p147 = scmp.ne.s32.totalorder %s142, %s144
      %p148 = scmp.eq.s32.totalorder %s24, 0
      %p149 = por %p147, %p148
      %p150 = scmp.ne.s32.totalorder %s142, %s144
      %p151 = scmp.eq.s32.totalorder %s29, 1
      %p152 = por %p150, %p151
      %p153 = scmp.ne.s32.totalorder %s144, %s145
      %p154 = scmp.eq.s32.totalorder %s29, 0
      %p155 = por %p153, %p154
      %p156 = scmp.ne.s32.totalorder %s144, %s145
      %p157 = scmp.eq.s32.totalorder %s30, 1
      %p158 = por %p156, %p157
      %p160 = scmp.ne.s32.totalorder %s145, %s159
      %p161 = scmp.eq.s32.totalorder %s30, 0
      %p162 = por %p160, %p161
      %s163 = ssub.s32 %s24, %s31
      %p164 = scmp.eq.s32.totalorder %s163, 0
      %s166 = sadd.s32 %s165, 1
      %s167 = scalar_select %p164, %s165, %s166
      %p170 = pneg %p164
      %p171 = scmp.eq.s32.totalorder %s24, 1
      %p172 = por %p170, %p171
      %p173 = scmp.ne.s32.totalorder %s165, %s168
      %p174 = scmp.eq.s32.totalorder %s24, 0
      %p175 = por %p173, %p174
      %p176 = scmp.ne.s32.totalorder %s165, %s168
      %p177 = scmp.eq.s32.totalorder %s29, 1
      %p178 = por %p176, %p177
      %p179 = scmp.ne.s32.totalorder %s168, %s169
      %p180 = scmp.eq.s32.totalorder %s29, 0
      %p181 = por %p179, %p180
      %p182 = scmp.ne.s32.totalorder %s168, %s169
      %p183 = scmp.eq.s32.totalorder %s30, 1
      %p184 = por %p182, %p183
      %p186 = scmp.ne.s32.totalorder %s169, %s185
      %p187 = scmp.eq.s32.totalorder %s30, 0
      %p188 = por %p186, %p187
      %s189 = ssub.s32 %s24, %s31
      %p190 = scmp.eq.s32.totalorder %s189, 0
      %s192 = sadd.s32 %s191, 1
      %s193 = scalar_select %p190, %s191, %s192
      %p196 = pneg %p190
      %p197 = scmp.eq.s32.totalorder %s24, 1
      %p198 = por %p196, %p197
      %p199 = scmp.ne.s32.totalorder %s191, %s194
      %p200 = scmp.eq.s32.totalorder %s24, 0
      %p201 = por %p199, %p200
      %p202 = scmp.ne.s32.totalorder %s191, %s194
      %p203 = scmp.eq.s32.totalorder %s29, 1
      %p204 = por %p202, %p203
      %p205 = scmp.ne.s32.totalorder %s194, %s195
      %p206 = scmp.eq.s32.totalorder %s29, 0
      %p207 = por %p205, %p206
      %p208 = scmp.ne.s32.totalorder %s194, %s195
      %p209 = scmp.eq.s32.totalorder %s30, 1
      %p210 = por %p208, %p209
      %p212 = scmp.ne.s32.totalorder %s195, %s211
      %p213 = scmp.eq.s32.totalorder %s30, 0
      %p214 = por %p212, %p213
      %p215 = scmp.le.s32.totalorder 1, %s24
      %p216 = scmp.lt.s32.totalorder %s24, 3
      %p217 = pnand %p215, %p216
      %p218 = pneg %p217
      // Predicated region
      $region9: #{tpu_custom_call.1} parent=5 // pred_check
        _
      $region10: #{tpu_custom_call.1} parent=5 // pred_check_branch
        %220 = sbr.rel (%p217) target = $region12
      $region11: #{tpu_custom_call.1} parent=5 // pred_region
        %s221 = ssub.s32 %s24, 1
        // Predicated region
        $region13: #{tpu_custom_call.1} parent=11 // pred_check
          %p222 = pneg %p71
        $region14: #{tpu_custom_call.1} parent=11 // pred_check_branch
          %224 = sbr.rel (%p222) target = $region16
        $region15: #{tpu_custom_call.1} parent=11 // pred_region
          _
        $region16: #{tpu_custom_call.1} parent=11 // pred_fallthru
          _
        // Predicated region
        $region17: #{tpu_custom_call.1} parent=11 // pred_check
          %p225 = pneg %p92
        $region18: #{tpu_custom_call.1} parent=11 // pred_check_branch
          %227 = sbr.rel (%p225) target = $region20
        $region19: #{tpu_custom_call.1} parent=11 // pred_region
          _
        $region20: #{tpu_custom_call.1} parent=11 // pred_fallthru
          _
        // Predicated region
        $region21: #{tpu_custom_call.1} parent=11 // pred_check
          %p228 = pneg %p113
        $region22: #{tpu_custom_call.1} parent=11 // pred_check_branch
          %230 = sbr.rel (%p228) target = $region24
        $region23: #{tpu_custom_call.1} parent=11 // pred_region
          %232 = vsyncadd [#allocation7], 0
          %s234 = sshll.u32 %s3, 4
          %s235 = int_to_ptr.hbm [resolvable:$true] %s234
          %s236 = sshll.u32 [#allocation6], 4
          %s237 = int_to_ptr.vmem [resolvable:$true] %s236
          %239 = dma.hbm_to_vmem [thread:$0]  %s235, 96, %s237, [#allocation7]
        $region24: #{tpu_custom_call.1} parent=11 // pred_fallthru
          _
        // Predicated region
        $region25: #{tpu_custom_call.1} parent=11 // pred_check
          %p240 = pneg %p134
        $region26: #{tpu_custom_call.1} parent=11 // pred_check_branch
          %242 = sbr.rel (%p240) target = $region28
        $region27: #{tpu_custom_call.1} parent=11 // pred_region
          _
        $region28: #{tpu_custom_call.1} parent=11 // pred_fallthru
          _
        // Predicated region
        $region29: #{tpu_custom_call.1} parent=11 // pred_check
          %p243 = pneg %p155
        $region30: #{tpu_custom_call.1} parent=11 // pred_check_branch
          %245 = sbr.rel (%p243) target = $region32
        $region31: #{tpu_custom_call.1} parent=11 // pred_region
          %247 = vsyncadd [#allocation7], 0
          %s248 = sshll.u32 %s5, 4
          %s249 = int_to_ptr.hbm [resolvable:$true] %s248
          %s250 = sshll.u32 [#allocation8], 4
          %s251 = int_to_ptr.vmem [resolvable:$true] %s250
          %256 = dma.hbm_to_vmem [thread:$0]  %s249, 512, %s251, [#allocation7], 256, 256, 16
        $region32: #{tpu_custom_call.1} parent=11 // pred_fallthru
          _
      $region12: #{tpu_custom_call.1} parent=5 // pred_fallthru
        _
      %p257 = scmp.lt.s32.totalorder %s24, 2
      // Predicated region
      $region33: #{tpu_custom_call.1} parent=5 // pred_check
        %p258 = pneg %p257
      $region34: #{tpu_custom_call.1} parent=5 // pred_check_branch
        %260 = sbr.rel (%p258) target = $region36
      $region35: #{tpu_custom_call.1} parent=5 // pred_region
        // Predicated region
        $region37: #{tpu_custom_call.1} parent=35 // pred_check
          %p261 = pneg %p44
        $region38: #{tpu_custom_call.1} parent=35 // pred_check_branch
          %263 = sbr.rel (%p261) target = $region40
        $region39: #{tpu_custom_call.1} parent=35 // pred_region
          %s264 = sand.u32 %s34, 1
          %s265 = scalar_lea.sflag [#allocation4], %s264
          %s266 = sand.u32 %s34, 1
          %s267 = smul.addr %s266, 64
          %s268 = scalar_lea.vmem [#allocation3], %s267
          %270 = vsyncadd %s265, 0
          %s271 = smul.addr %s24, 8
          %s272 = smul.addr %s271, 8
          %s273 = scalar_lea.hbm %s0, %s272
          %s274 = sshll.u32 %s273, 4
          %s275 = int_to_ptr.hbm [resolvable:$true] %s274
          %s276 = sshll.u32 %s268, 4
          %s277 = int_to_ptr.vmem [resolvable:$true] %s276
          %282 = dma.hbm_to_vmem [thread:$0]  %s275, 1024, %s277, %s265, 256, 256, 16
        $region40: #{tpu_custom_call.1} parent=35 // pred_fallthru
          _
      $region36: #{tpu_custom_call.1} parent=5 // pred_fallthru
        _
      %p283 = scmp.le.s32.totalorder 1, %s24
      %p284 = scmp.lt.s32.totalorder %s24, 3
      %p285 = pnand %p283, %p284
      %p286 = pneg %p285
      // Predicated region
      $region41: #{tpu_custom_call.1} parent=5 // pred_check
        _
      $region42: #{tpu_custom_call.1} parent=5 // pred_check_branch
        %288 = sbr.rel (%p285) target = $region44
      $region43: #{tpu_custom_call.1} parent=5 // pred_region
        %s289 = ssub.s32 %s24, 1
        %s290 = sand.u32 %s37, 1
        %s291 = scalar_lea.sflag [#allocation4], %s290
        %s292 = sand.u32 %s37, 1
        %s293 = smul.addr %s292, 64
        %s294 = scalar_lea.vmem [#allocation3], %s293
        // Predicated region
        $region45: #{tpu_custom_call.1} parent=43 // pred_check
          %p295 = pneg %p50
        $region46: #{tpu_custom_call.1} parent=43 // pred_check_branch
          %297 = sbr.rel (%p295) target = $region48
        $region47: #{tpu_custom_call.1} parent=43 // pred_region
          %299 = dma.done %s291, 1024
        $region48: #{tpu_custom_call.1} parent=43 // pred_fallthru
          _
        // Predicated region
        $region49: #{tpu_custom_call.1} parent=43 // pred_check
          %p300 = pneg %p113
        $region50: #{tpu_custom_call.1} parent=43 // pred_check_branch
          %302 = sbr.rel (%p300) target = $region52
        $region51: #{tpu_custom_call.1} parent=43 // pred_region
          %304 = dma.done [#allocation7], 96
        $region52: #{tpu_custom_call.1} parent=43 // pred_fallthru
          _
        // Predicated region
        $region53: #{tpu_custom_call.1} parent=43 // pred_check
          %p305 = pneg %p155
        $region54: #{tpu_custom_call.1} parent=43 // pred_check_branch
          %307 = sbr.rel (%p305) target = $region56
        $region55: #{tpu_custom_call.1} parent=43 // pred_region
          %309 = dma.done [#allocation7], 512
        $region56: #{tpu_custom_call.1} parent=43 // pred_fallthru
          _
        %s310 = sand.u32 %s37, 1
        %s311 = scalar_lea.sflag [#allocation4], %s310
        %s312 = sand.u32 %s37, 1
        %s313 = smul.addr %s312, 64
        %s314 = scalar_lea.vmem [#allocation3], %s313
        %p315 = pneg %p50
        %p316 = pneg %p47
        %p317 = pneg %p71
        %p318 = pneg %p68
        %p319 = pneg %p92
        %p320 = pneg %p89
        %p321 = pneg %p113
        %p322 = pneg %p110
        %p323 = pneg %p134
        %p324 = pneg %p131
        %p325 = pneg %p155
        %p326 = pneg %p152
        %p327 = pneg %p181
        %p328 = pneg %p178
        %s329 = sand.u32 %s168, 1
        %s330 = scalar_lea.sflag [#allocation5], %s329
        %s331 = sand.u32 %s168, 1
        %s332 = smul.addr %s331, 64
        %s333 = scalar_lea.vmem [#allocation9], %s332
        %p334 = pneg %p207
        %p335 = pneg %p204
        %s336 = sand.u32 %s194, 1
        %s337 = scalar_lea.sflag [#allocation11], %s336
        %s338 = sand.u32 %s194, 1
        %s339 = smul.addr %s338, 4
        %s340 = scalar_lea.vmem [#allocation10], %s339
        %v341 = vld [vmem:[%s294] sm:$0xff]
        %v342 = vld [vmem:[%s294 + $0x8] sm:$0xff]
        %v343 = vld [vmem:[%s294 + $0x10] sm:$0xff]
        %v344 = vld [vmem:[%s294 + $0x18] sm:$0xff]
        %v345 = vld [vmem:[%s294 + $0x20] sm:$0xff]
        %v346 = vld [vmem:[%s294 + $0x28] sm:$0xff]
        %v347 = vld [vmem:[%s294 + $0x30] sm:$0xff]
        %v348 = vld [vmem:[%s294 + $0x38] sm:$0xff]
        %v349 = vld [vmem:[%s1] sm:$0xff]
        %v350 = vld [vmem:[%s1 + $0x8] sm:$0xff]
        %v351 = vld [vmem:[%s1 + $0x10] sm:$0xff]
        %v352 = vld [vmem:[%s1 + $0x18] sm:$0xff]
        %v353 = vld [vmem:[%s2] sm:$0xff]
        %v354 = vld [vmem:[%s2 + $0x8] sm:$0xff]
        %v355 = vld [vmem:[%s2 + $0x10] sm:$0xff]
        %v356 = vld [vmem:[%s2 + $0x18] sm:$0xff]
        %358 = vset.pattern.permute.xlu0 0
        %359 = vperm.xlu0 %358, %v353
        %v360 = vpop.permute.xlu0 %359
        %363 = vset.pattern.permute.xlu0 0
        %364 = vperm.xlu0 %363, %v354
        %v365 = vpop.permute.xlu0 %364
        %368 = vset.pattern.permute.xlu0 0
        %369 = vperm.xlu0 %368, %v355
        %v370 = vpop.permute.xlu0 %369
        %373 = vset.pattern.permute.xlu0 0
        %374 = vperm.xlu0 %373, %v356
        %v375 = vpop.permute.xlu0 %374
        %vm377 = vcmask 261120
        %v379 = vsel %vm377, %v349, 0
        %v382 = vsel %vm377, %v350, 0
        %v385 = vsel %vm377, %v351, 0
        %v388 = vsel %vm377, %v352, 0
        %390 = vmatpush.msra.mxu0 0.0
        %391 = vmatpush.msra.mxu0 0.0
        %392 = vmatpush.msra.mxu0 0.0
        %393 = vmatpush.msra.mxu0 0.0
        %394 = vmatpush.msra.mxu0 0.0
        %395 = vmatpush.msra.mxu0 0.0
        %396 = vmatpush.msra.mxu0 0.0
        %397 = vmatpush.msra.mxu0 0.0
        %398 = vmatpush.msra.mxu0 0.0
        %399 = vmatpush.msra.mxu0 0.0
        %400 = vmatpush.msra.mxu0 0.0
        %401 = vmatpush.msra.mxu0 0.0
        %402 = vmatpush.msra.mxu0 %v347
        %403 = vmatpush.msra.mxu0 %v345
        %404 = vmatpush.msra.mxu0 %v343
        %405 = vmatpush.msra.mxu0 %v341
        %406 = vmatmul.f32.gmra.mxu0 %v379
        %v407 = vpop.f32.mrf.mxu0
        %v408 = vadd.f32 %v360, %v407
        %409 = vmatmul.f32.gmra.mxu0 %v382
        %v410 = vpop.f32.mrf.mxu0
        %v411 = vadd.f32 %v365, %v410
        %412 = vmatmul.f32.gmra.mxu0 %v385
        %v413 = vpop.f32.mrf.mxu0
        %v414 = vadd.f32 %v370, %v413
        %415 = vmatmul.f32.gmra.mxu0 %v388
        %v416 = vpop.f32.mrf.mxu0
        %v417 = vadd.f32 %v375, %v416
        %418 = vdwg.mxu0
        %419 = vmatpush.msra.mxu0 0.0
        %420 = vmatpush.msra.mxu0 0.0
        %421 = vmatpush.msra.mxu0 0.0
        %422 = vmatpush.msra.mxu0 0.0
        %423 = vmatpush.msra.mxu0 0.0
        %424 = vmatpush.msra.mxu0 0.0
        %425 = vmatpush.msra.mxu0 0.0
        %426 = vmatpush.msra.mxu0 0.0
        %427 = vmatpush.msra.mxu0 0.0
        %428 = vmatpush.msra.mxu0 0.0
        %429 = vmatpush.msra.mxu0 0.0
        %430 = vmatpush.msra.mxu0 0.0
        %431 = vmatpush.msra.mxu0 %v348
        %432 = vmatpush.msra.mxu0 %v346
        %433 = vmatpush.msra.mxu0 %v344
        %434 = vmatpush.msra.mxu0 %v342
        %435 = vmatmul.f32.gmra.mxu0 %v379
        %v436 = vpop.f32.mrf.mxu0
        %v437 = vadd.f32 %v360, %v436
        %438 = vmatmul.f32.gmra.mxu0 %v382
        %v439 = vpop.f32.mrf.mxu0
        %v440 = vadd.f32 %v365, %v439
        %441 = vmatmul.f32.gmra.mxu0 %v385
        %v442 = vpop.f32.mrf.mxu0
        %v443 = vadd.f32 %v370, %v442
        %444 = vmatmul.f32.gmra.mxu0 %v388
        %v445 = vpop.f32.mrf.mxu0
        %v446 = vadd.f32 %v375, %v445
        %447 = vdwg.mxu0
        %448 = vst [vmem:[%s333] sm:$0xff] %v408
        %449 = vst [vmem:[%s333 + $0x8] sm:$0xff] %v437
        %450 = vst [vmem:[%s333 + $0x10] sm:$0xff] %v411
        %451 = vst [vmem:[%s333 + $0x18] sm:$0xff] %v440
        %452 = vst [vmem:[%s333 + $0x20] sm:$0xff] %v414
        %453 = vst [vmem:[%s333 + $0x28] sm:$0xff] %v443
        %454 = vst [vmem:[%s333 + $0x30] sm:$0xff] %v417
        %455 = vst [vmem:[%s333 + $0x38] sm:$0xff] %v446
        %456 = vst [vmem:[#allocation2] sm:$0xff] 0.0
        %457 = vst [vmem:[#allocation2 + $0x8] sm:$0xff] 0.0
        %458 = vst [vmem:[#allocation2 + $0x10] sm:$0xff] 0.0
        %459 = vst [vmem:[#allocation2 + $0x18] sm:$0xff] 0.0
        %460 = vst [vmem:[#allocation2 + $0x20] sm:$0xff] 0.0
        %461 = vst [vmem:[#allocation2 + $0x28] sm:$0xff] 0.0
        %462 = vst [vmem:[#allocation2 + $0x30] sm:$0xff] 0.0
        %463 = vst [vmem:[#allocation2 + $0x38] sm:$0xff] 0.0
        %464 = vst [vmem:[#allocation2 + $0x40] sm:$0xff] 0.0
        %465 = vst [vmem:[#allocation2 + $0x48] sm:$0xff] 0.0
        %466 = vst [vmem:[#allocation2 + $0x50] sm:$0xff] 0.0
        %467 = vst [vmem:[#allocation2 + $0x58] sm:$0xff] 0.0
        %468 = vst [vmem:[#allocation2 + $0x60] sm:$0xff] 0.0
        %469 = vst [vmem:[#allocation2 + $0x68] sm:$0xff] 0.0
        %470 = vst [vmem:[#allocation2 + $0x70] sm:$0xff] 0.0
        %471 = vst [vmem:[#allocation2 + $0x78] sm:$0xff] 0.0
        %472 = vst [vmem:[#allocation2 + $0x8] sm:$0xff] %v408
        %473 = vst [vmem:[#allocation2 + $0x10] sm:$0xff] %v437
        %474 = vst [vmem:[#allocation2 + $0x28] sm:$0xff] %v411
        %475 = vst [vmem:[#allocation2 + $0x30] sm:$0xff] %v440
        %476 = vst [vmem:[#allocation2 + $0x48] sm:$0xff] %v414
        %477 = vst [vmem:[#allocation2 + $0x50] sm:$0xff] %v443
        %478 = vst [vmem:[#allocation2 + $0x68] sm:$0xff] %v417
        %479 = vst [vmem:[#allocation2 + $0x70] sm:$0xff] %v446
        %v480 = vld [vmem:[#allocation2] sm:$0xff]
        %v481 = vld [vmem:[#allocation2 + $0x8] sm:$0xff]
        %v482 = vld [vmem:[#allocation2 + $0x10] sm:$0xff]
        %v483 = vld [vmem:[#allocation2 + $0x20] sm:$0xff]
        %v484 = vld [vmem:[#allocation2 + $0x28] sm:$0xff]
        %v485 = vld [vmem:[#allocation2 + $0x30] sm:$0xff]
        %v486 = vld [vmem:[#allocation2 + $0x40] sm:$0xff]
        %v487 = vld [vmem:[#allocation2 + $0x48] sm:$0xff]
        %v488 = vld [vmem:[#allocation2 + $0x50] sm:$0xff]
        %v489 = vld [vmem:[#allocation2 + $0x60] sm:$0xff]
        %v490 = vld [vmem:[#allocation2 + $0x68] sm:$0xff]
        %v491 = vld [vmem:[#allocation2 + $0x70] sm:$0xff]
        %v492 = vld [vmem:[#allocation8] ss:$8 sm:$0x3]
        %v494 = vperm.slane %v492, 0
        %v495 = vperm.slane %v492, 1
        %496 = vrot.lane.b32.xlu0 %v494, 111
        %v497 = vpop.permute.xlu0 %496
        %498 = vrot.lane.b32.xlu0 %v495, 111
        %v499 = vpop.permute.xlu0 %498
        %vm500 = vcmask 908288
        %v501 = vsel %vm500, %v497, %v499
        %v505 = vmul.f32 %v480, %v497
        %v506 = vmul.f32 %v481, %v501
        %v507 = vmul.f32 %v482, %v499
        %v508 = vmul.f32 %v483, %v497
        %v509 = vmul.f32 %v484, %v501
        %v510 = vmul.f32 %v485, %v499
        %v511 = vmul.f32 %v486, %v497
        %v512 = vmul.f32 %v487, %v501
        %v513 = vmul.f32 %v488, %v499
        %v514 = vmul.f32 %v489, %v497
        %v515 = vmul.f32 %v490, %v501
        %v516 = vmul.f32 %v491, %v499
        %s517 = scalar_lea.vmem [#allocation8], 1
        %v518 = vld [vmem:[%s517] ss:$8 sm:$0x3]
        %v520 = vperm.slane %v518, 0
        %v521 = vperm.slane %v518, 1
        %522 = vrot.lane.b32.xlu0 %v520, 112
        %v523 = vpop.permute.xlu0 %522
        %524 = vrot.lane.b32.xlu0 %v521, 112
        %v525 = vpop.permute.xlu0 %524
        %vm526 = vcmask 916480
        %v527 = vsel %vm526, %v523, %v525
        %v531 = vmul.f32 %v480, %v523
        %v532 = vmul.f32 %v481, %v527
        %v533 = vmul.f32 %v482, %v525
        %v534 = vmul.f32 %v483, %v523
        %v535 = vmul.f32 %v484, %v527
        %v536 = vmul.f32 %v485, %v525
        %v537 = vmul.f32 %v486, %v523
        %v538 = vmul.f32 %v487, %v527
        %v539 = vmul.f32 %v488, %v525
        %v540 = vmul.f32 %v489, %v523
        %v541 = vmul.f32 %v490, %v527
        %v542 = vmul.f32 %v491, %v525
        %s543 = scalar_lea.vmem [#allocation8], 2
        %v544 = vld [vmem:[%s543] ss:$8 sm:$0x3]
        %v546 = vperm.slane %v544, 0
        %v547 = vperm.slane %v544, 1
        %548 = vrot.lane.b32.xlu0 %v546, 113
        %v549 = vpop.permute.xlu0 %548
        %550 = vrot.lane.b32.xlu0 %v547, 113
        %v551 = vpop.permute.xlu0 %550
        %vm552 = vcmask 924672
        %v553 = vsel %vm552, %v549, %v551
        %v557 = vmul.f32 %v480, %v549
        %v558 = vmul.f32 %v481, %v553
        %v559 = vmul.f32 %v482, %v551
        %v560 = vmul.f32 %v483, %v549
        %v561 = vmul.f32 %v484, %v553
        %v562 = vmul.f32 %v485, %v551
        %v563 = vmul.f32 %v486, %v549
        %v564 = vmul.f32 %v487, %v553
        %v565 = vmul.f32 %v488, %v551
        %v566 = vmul.f32 %v489, %v549
        %v567 = vmul.f32 %v490, %v553
        %v568 = vmul.f32 %v491, %v551
        %s569 = scalar_lea.vmem [#allocation8], 3
        %v570 = vld [vmem:[%s569] ss:$8 sm:$0x3]
        %v572 = vperm.slane %v570, 0
        %v573 = vperm.slane %v570, 1
        %574 = vrot.lane.b32.xlu0 %v572, 127
        %v575 = vpop.permute.xlu0 %574
        %576 = vrot.lane.b32.xlu0 %v573, 127
        %v577 = vpop.permute.xlu0 %576
        %vm578 = vcmask 1039360
        %v579 = vsel %vm578, %v575, %v577
        %v583 = vmul.f32 %v480, %v575
        %v584 = vmul.f32 %v481, %v579
        %v585 = vmul.f32 %v482, %v577
        %v586 = vmul.f32 %v483, %v575
        %v587 = vmul.f32 %v484, %v579
        %v588 = vmul.f32 %v485, %v577
        %v589 = vmul.f32 %v486, %v575
        %v590 = vmul.f32 %v487, %v579
        %v591 = vmul.f32 %v488, %v577
        %v592 = vmul.f32 %v489, %v575
        %v593 = vmul.f32 %v490, %v579
        %v594 = vmul.f32 %v491, %v577
        %s595 = scalar_lea.vmem [#allocation8], 4
        %v596 = vld [vmem:[%s595] ss:$8 sm:$0x3]
        %v598 = vperm.slane %v596, 0
        %v599 = vperm.slane %v596, 1
        %v602 = vmul.f32 %v481, %v598
        %v603 = vmul.f32 %v482, %v599
        %v604 = vmul.f32 %v484, %v598
        %v605 = vmul.f32 %v485, %v599
        %v606 = vmul.f32 %v487, %v598
        %v607 = vmul.f32 %v488, %v599
        %v608 = vmul.f32 %v490, %v598
        %v609 = vmul.f32 %v491, %v599
        %v610 = vld [vmem:[#allocation2 + $0x8] sm:$0xff]
        %v611 = vld [vmem:[#allocation2 + $0x10] sm:$0xff]
        %v612 = vld [vmem:[#allocation2 + $0x18] sm:$0xff]
        %v613 = vld [vmem:[#allocation2 + $0x28] sm:$0xff]
        %v614 = vld [vmem:[#allocation2 + $0x30] sm:$0xff]
        %v615 = vld [vmem:[#allocation2 + $0x38] sm:$0xff]
        %v616 = vld [vmem:[#allocation2 + $0x48] sm:$0xff]
        %v617 = vld [vmem:[#allocation2 + $0x50] sm:$0xff]
        %v618 = vld [vmem:[#allocation2 + $0x58] sm:$0xff]
        %v619 = vld [vmem:[#allocation2 + $0x68] sm:$0xff]
        %v620 = vld [vmem:[#allocation2 + $0x70] sm:$0xff]
        %v621 = vld [vmem:[#allocation2 + $0x78] sm:$0xff]
        %s622 = scalar_lea.vmem [#allocation8], 5
        %v623 = vld [vmem:[%s622] ss:$8 sm:$0x3]
        %v625 = vperm.slane %v623, 0
        %v626 = vperm.slane %v623, 1
        %627 = vrot.lane.b32.xlu0 %v625, 1
        %v628 = vpop.permute.xlu0 %627
        %629 = vrot.lane.b32.xlu0 %v626, 1
        %v630 = vpop.permute.xlu0 %629
        %vm631 = vcmask 7168
        %v632 = vsel %vm631, %v628, %v630
        %v636 = vmul.f32 %v610, %v628
        %v637 = vmul.f32 %v611, %v632
        %v638 = vmul.f32 %v612, %v630
        %v639 = vmul.f32 %v613, %v628
        %v640 = vmul.f32 %v614, %v632
        %v641 = vmul.f32 %v615, %v630
        %v642 = vmul.f32 %v616, %v628
        %v643 = vmul.f32 %v617, %v632
        %v644 = vmul.f32 %v618, %v630
        %v645 = vmul.f32 %v619, %v628
        %v646 = vmul.f32 %v620, %v632
        %v647 = vmul.f32 %v621, %v630
        %s648 = scalar_lea.vmem [#allocation8], 6
        %v649 = vld [vmem:[%s648] ss:$8 sm:$0x3]
        %v651 = vperm.slane %v649, 0
        %v652 = vperm.slane %v649, 1
        %653 = vrot.lane.b32.xlu0 %v651, 15
        %v654 = vpop.permute.xlu0 %653
        %655 = vrot.lane.b32.xlu0 %v652, 15
        %v656 = vpop.permute.xlu0 %655
        %vm657 = vcmask 121856
        %v658 = vsel %vm657, %v654, %v656
        %v662 = vmul.f32 %v610, %v654
        %v663 = vmul.f32 %v611, %v658
        %v664 = vmul.f32 %v612, %v656
        %v665 = vmul.f32 %v613, %v654
        %v666 = vmul.f32 %v614, %v658
        %v667 = vmul.f32 %v615, %v656
        %v668 = vmul.f32 %v616, %v654
        %v669 = vmul.f32 %v617, %v658
        %v670 = vmul.f32 %v618, %v656
        %v671 = vmul.f32 %v619, %v654
        %v672 = vmul.f32 %v620, %v658
        %v673 = vmul.f32 %v621, %v656
        %s674 = scalar_lea.vmem [#allocation8], 7
        %v675 = vld [vmem:[%s674] ss:$8 sm:$0x3]
        %v677 = vperm.slane %v675, 0
        %v678 = vperm.slane %v675, 1
        %679 = vrot.lane.b32.xlu0 %v677, 16
        %v680 = vpop.permute.xlu0 %679
        %681 = vrot.lane.b32.xlu0 %v678, 16
        %v682 = vpop.permute.xlu0 %681
        %vm683 = vcmask 130048
        %v684 = vsel %vm683, %v680, %v682
        %v688 = vmul.f32 %v610, %v680
        %v689 = vmul.f32 %v611, %v684
        %v690 = vmul.f32 %v612, %v682
        %v691 = vmul.f32 %v613, %v680
        %v692 = vmul.f32 %v614, %v684
        %v693 = vmul.f32 %v615, %v682
        %v694 = vmul.f32 %v616, %v680
        %v695 = vmul.f32 %v617, %v684
        %v696 = vmul.f32 %v618, %v682
        %v697 = vmul.f32 %v619, %v680
        %v698 = vmul.f32 %v620, %v684
        %v699 = vmul.f32 %v621, %v682
        %s700 = scalar_lea.vmem [#allocation8], 16
        %v701 = vld [vmem:[%s700] ss:$8 sm:$0x3]
        %v703 = vperm.slane %v701, 0
        %v704 = vperm.slane %v701, 1
        %705 = vrot.lane.b32.xlu0 %v703, 17
        %v706 = vpop.permute.xlu0 %705
        %707 = vrot.lane.b32.xlu0 %v704, 17
        %v708 = vpop.permute.xlu0 %707
        %vm709 = vcmask 138240
        %v710 = vsel %vm709, %v706, %v708
        %v714 = vmul.f32 %v610, %v706
        %v715 = vmul.f32 %v611, %v710
        %v716 = vmul.f32 %v612, %v708
        %v717 = vmul.f32 %v613, %v706
        %v718 = vmul.f32 %v614, %v710
        %v719 = vmul.f32 %v615, %v708
        %v720 = vmul.f32 %v616, %v706
        %v721 = vmul.f32 %v617, %v710
        %v722 = vmul.f32 %v618, %v708
        %v723 = vmul.f32 %v619, %v706
        %v724 = vmul.f32 %v620, %v710
        %v725 = vmul.f32 %v621, %v708
        %738 = vrot.lane.b32.xlu0 %v531, 127
        %v739 = vpop.permute.xlu0 %738
        %740 = vrot.lane.b32.xlu0 %v532, 127
        %v741 = vpop.permute.xlu0 %740
        %742 = vrot.lane.b32.xlu0 %v533, 127
        %v743 = vpop.permute.xlu0 %742
        %744 = vrot.lane.b32.xlu0 %v534, 127
        %v745 = vpop.permute.xlu0 %744
        %746 = vrot.lane.b32.xlu0 %v535, 127
        %v747 = vpop.permute.xlu0 %746
        %748 = vrot.lane.b32.xlu0 %v536, 127
        %v749 = vpop.permute.xlu0 %748
        %750 = vrot.lane.b32.xlu0 %v537, 127
        %v751 = vpop.permute.xlu0 %750
        %752 = vrot.lane.b32.xlu0 %v538, 127
        %v753 = vpop.permute.xlu0 %752
        %754 = vrot.lane.b32.xlu0 %v539, 127
        %v755 = vpop.permute.xlu0 %754
        %756 = vrot.lane.b32.xlu0 %v540, 127
        %v757 = vpop.permute.xlu0 %756
        %758 = vrot.lane.b32.xlu0 %v541, 127
        %v759 = vpop.permute.xlu0 %758
        %760 = vrot.lane.b32.xlu0 %v542, 127
        %v761 = vpop.permute.xlu0 %760
        %v762 = vsel %vm578, %v739, %v741
        %v763 = vsel %vm578, %v741, %v743
        %v764 = vsel %vm578, %v745, %v747
        %v765 = vsel %vm578, %v747, %v749
        %v766 = vsel %vm578, %v751, %v753
        %v767 = vsel %vm578, %v753, %v755
        %v768 = vsel %vm578, %v757, %v759
        %v769 = vsel %vm578, %v759, %v761
        %782 = vrot.lane.b32.xlu0 %v557, 126
        %v783 = vpop.permute.xlu0 %782
        %784 = vrot.lane.b32.xlu0 %v558, 126
        %v785 = vpop.permute.xlu0 %784
        %786 = vrot.lane.b32.xlu0 %v559, 126
        %v787 = vpop.permute.xlu0 %786
        %788 = vrot.lane.b32.xlu0 %v560, 126
        %v789 = vpop.permute.xlu0 %788
        %790 = vrot.lane.b32.xlu0 %v561, 126
        %v791 = vpop.permute.xlu0 %790
        %792 = vrot.lane.b32.xlu0 %v562, 126
        %v793 = vpop.permute.xlu0 %792
        %794 = vrot.lane.b32.xlu0 %v563, 126
        %v795 = vpop.permute.xlu0 %794
        %796 = vrot.lane.b32.xlu0 %v564, 126
        %v797 = vpop.permute.xlu0 %796
        %798 = vrot.lane.b32.xlu0 %v565, 126
        %v799 = vpop.permute.xlu0 %798
        %800 = vrot.lane.b32.xlu0 %v566, 126
        %v801 = vpop.permute.xlu0 %800
        %802 = vrot.lane.b32.xlu0 %v567, 126
        %v803 = vpop.permute.xlu0 %802
        %804 = vrot.lane.b32.xlu0 %v568, 126
        %v805 = vpop.permute.xlu0 %804
        %vm806 = vcmask 1031168
        %v807 = vsel %vm806, %v783, %v785
        %v808 = vsel %vm806, %v785, %v787
        %v809 = vsel %vm806, %v789, %v791
        %v810 = vsel %vm806, %v791, %v793
        %v811 = vsel %vm806, %v795, %v797
        %v812 = vsel %vm806, %v797, %v799
        %v813 = vsel %vm806, %v801, %v803
        %v814 = vsel %vm806, %v803, %v805
        %827 = vrot.lane.b32.xlu0 %v583, 112
        %v828 = vpop.permute.xlu0 %827
        %829 = vrot.lane.b32.xlu0 %v584, 112
        %v830 = vpop.permute.xlu0 %829
        %831 = vrot.lane.b32.xlu0 %v585, 112
        %v832 = vpop.permute.xlu0 %831
        %833 = vrot.lane.b32.xlu0 %v586, 112
        %v834 = vpop.permute.xlu0 %833
        %835 = vrot.lane.b32.xlu0 %v587, 112
        %v836 = vpop.permute.xlu0 %835
        %837 = vrot.lane.b32.xlu0 %v588, 112
        %v838 = vpop.permute.xlu0 %837
        %839 = vrot.lane.b32.xlu0 %v589, 112
        %v840 = vpop.permute.xlu0 %839
        %841 = vrot.lane.b32.xlu0 %v590, 112
        %v842 = vpop.permute.xlu0 %841
        %843 = vrot.lane.b32.xlu0 %v591, 112
        %v844 = vpop.permute.xlu0 %843
        %845 = vrot.lane.b32.xlu0 %v592, 112
        %v846 = vpop.permute.xlu0 %845
        %847 = vrot.lane.b32.xlu0 %v593, 112
        %v848 = vpop.permute.xlu0 %847
        %849 = vrot.lane.b32.xlu0 %v594, 112
        %v850 = vpop.permute.xlu0 %849
        %v851 = vsel %vm526, %v828, %v830
        %v852 = vsel %vm526, %v830, %v832
        %v853 = vsel %vm526, %v834, %v836
        %v854 = vsel %vm526, %v836, %v838
        %v855 = vsel %vm526, %v840, %v842
        %v856 = vsel %vm526, %v842, %v844
        %v857 = vsel %vm526, %v846, %v848
        %v858 = vsel %vm526, %v848, %v850
        %867 = vrot.lane.b32.xlu0 %v602, 111
        %v868 = vpop.permute.xlu0 %867
        %869 = vrot.lane.b32.xlu0 %v603, 111
        %v870 = vpop.permute.xlu0 %869
        %871 = vrot.lane.b32.xlu0 %v604, 111
        %v872 = vpop.permute.xlu0 %871
        %873 = vrot.lane.b32.xlu0 %v605, 111
        %v874 = vpop.permute.xlu0 %873
        %875 = vrot.lane.b32.xlu0 %v606, 111
        %v876 = vpop.permute.xlu0 %875
        %877 = vrot.lane.b32.xlu0 %v607, 111
        %v878 = vpop.permute.xlu0 %877
        %879 = vrot.lane.b32.xlu0 %v608, 111
        %v880 = vpop.permute.xlu0 %879
        %881 = vrot.lane.b32.xlu0 %v609, 111
        %v882 = vpop.permute.xlu0 %881
        %v883 = vsel %vm500, %v868, %v870
        %v884 = vsel %vm500, %v872, %v874
        %v885 = vsel %vm500, %v876, %v878
        %v886 = vsel %vm500, %v880, %v882
        %899 = vrot.lane.b32.xlu0 %v636, 110
        %v900 = vpop.permute.xlu0 %899
        %901 = vrot.lane.b32.xlu0 %v637, 110
        %v902 = vpop.permute.xlu0 %901
        %903 = vrot.lane.b32.xlu0 %v638, 110
        %v904 = vpop.permute.xlu0 %903
        %905 = vrot.lane.b32.xlu0 %v639, 110
        %v906 = vpop.permute.xlu0 %905
        %907 = vrot.lane.b32.xlu0 %v640, 110
        %v908 = vpop.permute.xlu0 %907
        %909 = vrot.lane.b32.xlu0 %v641, 110
        %v910 = vpop.permute.xlu0 %909
        %911 = vrot.lane.b32.xlu0 %v642, 110
        %v912 = vpop.permute.xlu0 %911
        %913 = vrot.lane.b32.xlu0 %v643, 110
        %v914 = vpop.permute.xlu0 %913
        %915 = vrot.lane.b32.xlu0 %v644, 110
        %v916 = vpop.permute.xlu0 %915
        %917 = vrot.lane.b32.xlu0 %v645, 110
        %v918 = vpop.permute.xlu0 %917
        %919 = vrot.lane.b32.xlu0 %v646, 110
        %v920 = vpop.permute.xlu0 %919
        %921 = vrot.lane.b32.xlu0 %v647, 110
        %v922 = vpop.permute.xlu0 %921
        %vm923 = vcmask 900096
        %v924 = vsel %vm923, %v900, %v902
        %v925 = vsel %vm923, %v902, %v904
        %v926 = vsel %vm923, %v906, %v908
        %v927 = vsel %vm923, %v908, %v910
        %v928 = vsel %vm923, %v912, %v914
        %v929 = vsel %vm923, %v914, %v916
        %v930 = vsel %vm923, %v918, %v920
        %v931 = vsel %vm923, %v920, %v922
        %944 = vrot.lane.b32.xlu0 %v662, 96
        %v945 = vpop.permute.xlu0 %944
        %946 = vrot.lane.b32.xlu0 %v663, 96
        %v947 = vpop.permute.xlu0 %946
        %948 = vrot.lane.b32.xlu0 %v664, 96
        %v949 = vpop.permute.xlu0 %948
        %950 = vrot.lane.b32.xlu0 %v665, 96
        %v951 = vpop.permute.xlu0 %950
        %952 = vrot.lane.b32.xlu0 %v666, 96
        %v953 = vpop.permute.xlu0 %952
        %954 = vrot.lane.b32.xlu0 %v667, 96
        %v955 = vpop.permute.xlu0 %954
        %956 = vrot.lane.b32.xlu0 %v668, 96
        %v957 = vpop.permute.xlu0 %956
        %958 = vrot.lane.b32.xlu0 %v669, 96
        %v959 = vpop.permute.xlu0 %958
        %960 = vrot.lane.b32.xlu0 %v670, 96
        %v961 = vpop.permute.xlu0 %960
        %962 = vrot.lane.b32.xlu0 %v671, 96
        %v963 = vpop.permute.xlu0 %962
        %964 = vrot.lane.b32.xlu0 %v672, 96
        %v965 = vpop.permute.xlu0 %964
        %966 = vrot.lane.b32.xlu0 %v673, 96
        %v967 = vpop.permute.xlu0 %966
        %vm968 = vcmask 785408
        %v969 = vsel %vm968, %v945, %v947
        %v970 = vsel %vm968, %v947, %v949
        %v971 = vsel %vm968, %v951, %v953
        %v972 = vsel %vm968, %v953, %v955
        %v973 = vsel %vm968, %v957, %v959
        %v974 = vsel %vm968, %v959, %v961
        %v975 = vsel %vm968, %v963, %v965
        %v976 = vsel %vm968, %v965, %v967
        %989 = vrot.lane.b32.xlu0 %v688, 95
        %v990 = vpop.permute.xlu0 %989
        %991 = vrot.lane.b32.xlu0 %v689, 95
        %v992 = vpop.permute.xlu0 %991
        %993 = vrot.lane.b32.xlu0 %v690, 95
        %v994 = vpop.permute.xlu0 %993
        %995 = vrot.lane.b32.xlu0 %v691, 95
        %v996 = vpop.permute.xlu0 %995
        %997 = vrot.lane.b32.xlu0 %v692, 95
        %v998 = vpop.permute.xlu0 %997
        %999 = vrot.lane.b32.xlu0 %v693, 95
        %v1000 = vpop.permute.xlu0 %999
        %1001 = vrot.lane.b32.xlu0 %v694, 95
        %v1002 = vpop.permute.xlu0 %1001
        %1003 = vrot.lane.b32.xlu0 %v695, 95
        %v1004 = vpop.permute.xlu0 %1003
        %1005 = vrot.lane.b32.xlu0 %v696, 95
        %v1006 = vpop.permute.xlu0 %1005
        %1007 = vrot.lane.b32.xlu0 %v697, 95
        %v1008 = vpop.permute.xlu0 %1007
        %1009 = vrot.lane.b32.xlu0 %v698, 95
        %v1010 = vpop.permute.xlu0 %1009
        %1011 = vrot.lane.b32.xlu0 %v699, 95
        %v1012 = vpop.permute.xlu0 %1011
        %vm1013 = vcmask 777216
        %v1014 = vsel %vm1013, %v990, %v992
        %v1015 = vsel %vm1013, %v992, %v994
        %v1016 = vsel %vm1013, %v996, %v998
        %v1017 = vsel %vm1013, %v998, %v1000
        %v1018 = vsel %vm1013, %v1002, %v1004
        %v1019 = vsel %vm1013, %v1004, %v1006
        %v1020 = vsel %vm1013, %v1008, %v1010
        %v1021 = vsel %vm1013, %v1010, %v1012
        %1034 = vrot.lane.b32.xlu0 %v714, 94
        %v1035 = vpop.permute.xlu0 %1034
        %1036 = vrot.lane.b32.xlu0 %v715, 94
        %v1037 = vpop.permute.xlu0 %1036
        %1038 = vrot.lane.b32.xlu0 %v716, 94
        %v1039 = vpop.permute.xlu0 %1038
        %1040 = vrot.lane.b32.xlu0 %v717, 94
        %v1041 = vpop.permute.xlu0 %1040
        %1042 = vrot.lane.b32.xlu0 %v718, 94
        %v1043 = vpop.permute.xlu0 %1042
        %1044 = vrot.lane.b32.xlu0 %v719, 94
        %v1045 = vpop.permute.xlu0 %1044
        %1046 = vrot.lane.b32.xlu0 %v720, 94
        %v1047 = vpop.permute.xlu0 %1046
        %1048 = vrot.lane.b32.xlu0 %v721, 94
        %v1049 = vpop.permute.xlu0 %1048
        %1050 = vrot.lane.b32.xlu0 %v722, 94
        %v1051 = vpop.permute.xlu0 %1050
        %1052 = vrot.lane.b32.xlu0 %v723, 94
        %v1053 = vpop.permute.xlu0 %1052
        %1054 = vrot.lane.b32.xlu0 %v724, 94
        %v1055 = vpop.permute.xlu0 %1054
        %1056 = vrot.lane.b32.xlu0 %v725, 94
        %v1057 = vpop.permute.xlu0 %1056
        %vm1058 = vcmask 769024
        %v1059 = vsel %vm1058, %v1035, %v1037
        %v1060 = vsel %vm1058, %v1037, %v1039
        %v1061 = vsel %vm1058, %v1041, %v1043
        %v1062 = vsel %vm1058, %v1043, %v1045
        %v1063 = vsel %vm1058, %v1047, %v1049
        %v1064 = vsel %vm1058, %v1049, %v1051
        %v1065 = vsel %vm1058, %v1053, %v1055
        %v1066 = vsel %vm1058, %v1055, %v1057
        %v1067 = vld [vmem:[#allocation6] sm:$0x3f]
        %v1068 = vld [vmem:[%s4] sm:$0x3]
        %1070 = vset.pattern.permute.xlu0 0
        %1071 = vperm.xlu0 %1070, %v1068
        %v1072 = vpop.permute.xlu0 %1071
        %1075 = vst [vmem:[#allocation1] ss:$4 sm:$0xff] %v1067
        %v1076 = vld.sshfl [vmem:[#allocation1] sm:$0xff pattern:$0x73625140]
        %v1077 = vld.sshfl [vmem:[#allocation1 + $0x8] sm:$0xff pattern:$0x73625140]
        %v1078 = vld.sshfl [vmem:[#allocation1 + $0x10] sm:$0xff pattern:$0x73625140]
        %1093 = vrot.lane.b32.xlu0 %v505, 17
        %v1094 = vpop.permute.xlu0 %1093
        %1095 = vrot.lane.b32.xlu0 %v506, 17
        %v1096 = vpop.permute.xlu0 %1095
        %1097 = vrot.lane.b32.xlu0 %v507, 17
        %v1098 = vpop.permute.xlu0 %1097
        %1099 = vrot.lane.b32.xlu0 %v508, 17
        %v1100 = vpop.permute.xlu0 %1099
        %1101 = vrot.lane.b32.xlu0 %v509, 17
        %v1102 = vpop.permute.xlu0 %1101
        %1103 = vrot.lane.b32.xlu0 %v510, 17
        %v1104 = vpop.permute.xlu0 %1103
        %1105 = vrot.lane.b32.xlu0 %v511, 17
        %v1106 = vpop.permute.xlu0 %1105
        %1107 = vrot.lane.b32.xlu0 %v512, 17
        %v1108 = vpop.permute.xlu0 %1107
        %1109 = vrot.lane.b32.xlu0 %v513, 17
        %v1110 = vpop.permute.xlu0 %1109
        %1111 = vrot.lane.b32.xlu0 %v514, 17
        %v1112 = vpop.permute.xlu0 %1111
        %1113 = vrot.lane.b32.xlu0 %v515, 17
        %v1114 = vpop.permute.xlu0 %1113
        %1115 = vrot.lane.b32.xlu0 %v516, 17
        %v1116 = vpop.permute.xlu0 %1115
        %1117 = vrot.lane.b32.xlu0 %v762, 17
        %v1118 = vpop.permute.xlu0 %1117
        %1119 = vrot.lane.b32.xlu0 %v763, 17
        %v1120 = vpop.permute.xlu0 %1119
        %1121 = vrot.lane.b32.xlu0 %v743, 17
        %v1122 = vpop.permute.xlu0 %1121
        %1123 = vrot.lane.b32.xlu0 %v764, 17
        %v1124 = vpop.permute.xlu0 %1123
        %1125 = vrot.lane.b32.xlu0 %v765, 17
        %v1126 = vpop.permute.xlu0 %1125
        %1127 = vrot.lane.b32.xlu0 %v749, 17
        %v1128 = vpop.permute.xlu0 %1127
        %1129 = vrot.lane.b32.xlu0 %v766, 17
        %v1130 = vpop.permute.xlu0 %1129
        %1131 = vrot.lane.b32.xlu0 %v767, 17
        %v1132 = vpop.permute.xlu0 %1131
        %1133 = vrot.lane.b32.xlu0 %v755, 17
        %v1134 = vpop.permute.xlu0 %1133
        %1135 = vrot.lane.b32.xlu0 %v768, 17
        %v1136 = vpop.permute.xlu0 %1135
        %1137 = vrot.lane.b32.xlu0 %v769, 17
        %v1138 = vpop.permute.xlu0 %1137
        %1139 = vrot.lane.b32.xlu0 %v761, 17
        %v1140 = vpop.permute.xlu0 %1139
        %1141 = vrot.lane.b32.xlu0 %v807, 17
        %v1142 = vpop.permute.xlu0 %1141
        %1143 = vrot.lane.b32.xlu0 %v808, 17
        %v1144 = vpop.permute.xlu0 %1143
        %1145 = vrot.lane.b32.xlu0 %v787, 17
        %v1146 = vpop.permute.xlu0 %1145
        %1147 = vrot.lane.b32.xlu0 %v809, 17
        %v1148 = vpop.permute.xlu0 %1147
        %1149 = vrot.lane.b32.xlu0 %v810, 17
        %v1150 = vpop.permute.xlu0 %1149
        %1151 = vrot.lane.b32.xlu0 %v793, 17
        %v1152 = vpop.permute.xlu0 %1151
        %1153 = vrot.lane.b32.xlu0 %v811, 17
        %v1154 = vpop.permute.xlu0 %1153
        %1155 = vrot.lane.b32.xlu0 %v812, 17
        %v1156 = vpop.permute.xlu0 %1155
        %1157 = vrot.lane.b32.xlu0 %v799, 17
        %v1158 = vpop.permute.xlu0 %1157
        %1159 = vrot.lane.b32.xlu0 %v813, 17
        %v1160 = vpop.permute.xlu0 %1159
        %1161 = vrot.lane.b32.xlu0 %v814, 17
        %v1162 = vpop.permute.xlu0 %1161
        %1163 = vrot.lane.b32.xlu0 %v805, 17
        %v1164 = vpop.permute.xlu0 %1163
        %1165 = vrot.lane.b32.xlu0 %v851, 17
        %v1166 = vpop.permute.xlu0 %1165
        %1167 = vrot.lane.b32.xlu0 %v852, 17
        %v1168 = vpop.permute.xlu0 %1167
        %1169 = vrot.lane.b32.xlu0 %v832, 17
        %v1170 = vpop.permute.xlu0 %1169
        %1171 = vrot.lane.b32.xlu0 %v853, 17
        %v1172 = vpop.permute.xlu0 %1171
        %1173 = vrot.lane.b32.xlu0 %v854, 17
        %v1174 = vpop.permute.xlu0 %1173
        %1175 = vrot.lane.b32.xlu0 %v838, 17
        %v1176 = vpop.permute.xlu0 %1175
        %1177 = vrot.lane.b32.xlu0 %v855, 17
        %v1178 = vpop.permute.xlu0 %1177
        %1179 = vrot.lane.b32.xlu0 %v856, 17
        %v1180 = vpop.permute.xlu0 %1179
        %1181 = vrot.lane.b32.xlu0 %v844, 17
        %v1182 = vpop.permute.xlu0 %1181
        %1183 = vrot.lane.b32.xlu0 %v857, 17
        %v1184 = vpop.permute.xlu0 %1183
        %1185 = vrot.lane.b32.xlu0 %v858, 17
        %v1186 = vpop.permute.xlu0 %1185
        %1187 = vrot.lane.b32.xlu0 %v850, 17
        %v1188 = vpop.permute.xlu0 %1187
        %1189 = vrot.lane.b32.xlu0 %v868, 17
        %v1190 = vpop.permute.xlu0 %1189
        %1191 = vrot.lane.b32.xlu0 %v883, 17
        %v1192 = vpop.permute.xlu0 %1191
        %1193 = vrot.lane.b32.xlu0 %v870, 17
        %v1194 = vpop.permute.xlu0 %1193
        %1195 = vrot.lane.b32.xlu0 %v872, 17
        %v1196 = vpop.permute.xlu0 %1195
        %1197 = vrot.lane.b32.xlu0 %v884, 17
        %v1198 = vpop.permute.xlu0 %1197
        %1199 = vrot.lane.b32.xlu0 %v874, 17
        %v1200 = vpop.permute.xlu0 %1199
        %1201 = vrot.lane.b32.xlu0 %v876, 17
        %v1202 = vpop.permute.xlu0 %1201
        %1203 = vrot.lane.b32.xlu0 %v885, 17
        %v1204 = vpop.permute.xlu0 %1203
        %1205 = vrot.lane.b32.xlu0 %v878, 17
        %v1206 = vpop.permute.xlu0 %1205
        %1207 = vrot.lane.b32.xlu0 %v880, 17
        %v1208 = vpop.permute.xlu0 %1207
        %1209 = vrot.lane.b32.xlu0 %v886, 17
        %v1210 = vpop.permute.xlu0 %1209
        %1211 = vrot.lane.b32.xlu0 %v882, 17
        %v1212 = vpop.permute.xlu0 %1211
        %1213 = vrot.lane.b32.xlu0 %v900, 17
        %v1214 = vpop.permute.xlu0 %1213
        %1215 = vrot.lane.b32.xlu0 %v924, 17
        %v1216 = vpop.permute.xlu0 %1215
        %1217 = vrot.lane.b32.xlu0 %v925, 17
        %v1218 = vpop.permute.xlu0 %1217
        %1219 = vrot.lane.b32.xlu0 %v906, 17
        %v1220 = vpop.permute.xlu0 %1219
        %1221 = vrot.lane.b32.xlu0 %v926, 17
        %v1222 = vpop.permute.xlu0 %1221
        %1223 = vrot.lane.b32.xlu0 %v927, 17
        %v1224 = vpop.permute.xlu0 %1223
        %1225 = vrot.lane.b32.xlu0 %v912, 17
        %v1226 = vpop.permute.xlu0 %1225
        %1227 = vrot.lane.b32.xlu0 %v928, 17
        %v1228 = vpop.permute.xlu0 %1227
        %1229 = vrot.lane.b32.xlu0 %v929, 17
        %v1230 = vpop.permute.xlu0 %1229
        %1231 = vrot.lane.b32.xlu0 %v918, 17
        %v1232 = vpop.permute.xlu0 %1231
        %1233 = vrot.lane.b32.xlu0 %v930, 17
        %v1234 = vpop.permute.xlu0 %1233
        %1235 = vrot.lane.b32.xlu0 %v931, 17
        %v1236 = vpop.permute.xlu0 %1235
        %1237 = vrot.lane.b32.xlu0 %v945, 17
        %v1238 = vpop.permute.xlu0 %1237
        %1239 = vrot.lane.b32.xlu0 %v969, 17
        %v1240 = vpop.permute.xlu0 %1239
        %1241 = vrot.lane.b32.xlu0 %v970, 17
        %v1242 = vpop.permute.xlu0 %1241
        %1243 = vrot.lane.b32.xlu0 %v951, 17
        %v1244 = vpop.permute.xlu0 %1243
        %1245 = vrot.lane.b32.xlu0 %v971, 17
        %v1246 = vpop.permute.xlu0 %1245
        %1247 = vrot.lane.b32.xlu0 %v972, 17
        %v1248 = vpop.permute.xlu0 %1247
        %1249 = vrot.lane.b32.xlu0 %v957, 17
        %v1250 = vpop.permute.xlu0 %1249
        %1251 = vrot.lane.b32.xlu0 %v973, 17
        %v1252 = vpop.permute.xlu0 %1251
        %1253 = vrot.lane.b32.xlu0 %v974, 17
        %v1254 = vpop.permute.xlu0 %1253
        %1255 = vrot.lane.b32.xlu0 %v963, 17
        %v1256 = vpop.permute.xlu0 %1255
        %1257 = vrot.lane.b32.xlu0 %v975, 17
        %v1258 = vpop.permute.xlu0 %1257
        %1259 = vrot.lane.b32.xlu0 %v976, 17
        %v1260 = vpop.permute.xlu0 %1259
        %1261 = vrot.lane.b32.xlu0 %v990, 17
        %v1262 = vpop.permute.xlu0 %1261
        %1263 = vrot.lane.b32.xlu0 %v1014, 17
        %v1264 = vpop.permute.xlu0 %1263
        %1265 = vrot.lane.b32.xlu0 %v1015, 17
        %v1266 = vpop.permute.xlu0 %1265
        %1267 = vrot.lane.b32.xlu0 %v996, 17
        %v1268 = vpop.permute.xlu0 %1267
        %1269 = vrot.lane.b32.xlu0 %v1016, 17
        %v1270 = vpop.permute.xlu0 %1269
        %1271 = vrot.lane.b32.xlu0 %v1017, 17
        %v1272 = vpop.permute.xlu0 %1271
        %1273 = vrot.lane.b32.xlu0 %v1002, 17
        %v1274 = vpop.permute.xlu0 %1273
        %1275 = vrot.lane.b32.xlu0 %v1018, 17
        %v1276 = vpop.permute.xlu0 %1275
        %1277 = vrot.lane.b32.xlu0 %v1019, 17
        %v1278 = vpop.permute.xlu0 %1277
        %1279 = vrot.lane.b32.xlu0 %v1008, 17
        %v1280 = vpop.permute.xlu0 %1279
        %1281 = vrot.lane.b32.xlu0 %v1020, 17
        %v1282 = vpop.permute.xlu0 %1281
        %1283 = vrot.lane.b32.xlu0 %v1021, 17
        %v1284 = vpop.permute.xlu0 %1283
        %1285 = vrot.lane.b32.xlu0 %v1035, 17
        %v1286 = vpop.permute.xlu0 %1285
        %1287 = vrot.lane.b32.xlu0 %v1059, 17
        %v1288 = vpop.permute.xlu0 %1287
        %1289 = vrot.lane.b32.xlu0 %v1060, 17
        %v1290 = vpop.permute.xlu0 %1289
        %1291 = vrot.lane.b32.xlu0 %v1041, 17
        %v1292 = vpop.permute.xlu0 %1291
        %1293 = vrot.lane.b32.xlu0 %v1061, 17
        %v1294 = vpop.permute.xlu0 %1293
        %1295 = vrot.lane.b32.xlu0 %v1062, 17
        %v1296 = vpop.permute.xlu0 %1295
        %1297 = vrot.lane.b32.xlu0 %v1047, 17
        %v1298 = vpop.permute.xlu0 %1297
        %1299 = vrot.lane.b32.xlu0 %v1063, 17
        %v1300 = vpop.permute.xlu0 %1299
        %1301 = vrot.lane.b32.xlu0 %v1064, 17
        %v1302 = vpop.permute.xlu0 %1301
        %1303 = vrot.lane.b32.xlu0 %v1053, 17
        %v1304 = vpop.permute.xlu0 %1303
        %1305 = vrot.lane.b32.xlu0 %v1065, 17
        %v1306 = vpop.permute.xlu0 %1305
        %1307 = vrot.lane.b32.xlu0 %v1066, 17
        %v1308 = vpop.permute.xlu0 %1307
        %v1309 = vsel %vm709, %v1094, %v1096
        %v1310 = vsel %vm709, %v1096, %v1098
        %v1311 = vsel %vm709, %v1100, %v1102
        %v1312 = vsel %vm709, %v1102, %v1104
        %v1313 = vsel %vm709, %v1106, %v1108
        %v1314 = vsel %vm709, %v1108, %v1110
        %v1315 = vsel %vm709, %v1112, %v1114
        %v1316 = vsel %vm709, %v1114, %v1116
        %v1317 = vsel %vm709, %v1118, %v1120
        %v1318 = vsel %vm709, %v1120, %v1122
        %v1319 = vsel %vm709, %v1124, %v1126
        %v1320 = vsel %vm709, %v1126, %v1128
        %v1321 = vsel %vm709, %v1130, %v1132
        %v1322 = vsel %vm709, %v1132, %v1134
        %v1323 = vsel %vm709, %v1136, %v1138
        %v1324 = vsel %vm709, %v1138, %v1140
        %v1325 = vsel %vm709, %v1142, %v1144
        %v1326 = vsel %vm709, %v1144, %v1146
        %v1327 = vsel %vm709, %v1148, %v1150
        %v1328 = vsel %vm709, %v1150, %v1152
        %v1329 = vsel %vm709, %v1154, %v1156
        %v1330 = vsel %vm709, %v1156, %v1158
        %v1331 = vsel %vm709, %v1160, %v1162
        %v1332 = vsel %vm709, %v1162, %v1164
        %v1333 = vsel %vm709, %v1166, %v1168
        %v1334 = vsel %vm709, %v1168, %v1170
        %v1335 = vsel %vm709, %v1172, %v1174
        %v1336 = vsel %vm709, %v1174, %v1176
        %v1337 = vsel %vm709, %v1178, %v1180
        %v1338 = vsel %vm709, %v1180, %v1182
        %v1339 = vsel %vm709, %v1184, %v1186
        %v1340 = vsel %vm709, %v1186, %v1188
        %v1341 = vsel %vm709, %v1190, %v1192
        %v1342 = vsel %vm709, %v1192, %v1194
        %v1343 = vsel %vm709, %v1196, %v1198
        %v1344 = vsel %vm709, %v1198, %v1200
        %v1345 = vsel %vm709, %v1202, %v1204
        %v1346 = vsel %vm709, %v1204, %v1206
        %v1347 = vsel %vm709, %v1208, %v1210
        %v1348 = vsel %vm709, %v1210, %v1212
        %v1349 = vsel %vm709, %v1214, %v1216
        %v1350 = vsel %vm709, %v1216, %v1218
        %v1351 = vsel %vm709, %v1220, %v1222
        %v1352 = vsel %vm709, %v1222, %v1224
        %v1353 = vsel %vm709, %v1226, %v1228
        %v1354 = vsel %vm709, %v1228, %v1230
        %v1355 = vsel %vm709, %v1232, %v1234
        %v1356 = vsel %vm709, %v1234, %v1236
        %v1357 = vsel %vm709, %v1238, %v1240
        %v1358 = vsel %vm709, %v1240, %v1242
        %v1359 = vsel %vm709, %v1244, %v1246
        %v1360 = vsel %vm709, %v1246, %v1248
        %v1361 = vsel %vm709, %v1250, %v1252
        %v1362 = vsel %vm709, %v1252, %v1254
        %v1363 = vsel %vm709, %v1256, %v1258
        %v1364 = vsel %vm709, %v1258, %v1260
        %v1365 = vsel %vm709, %v1262, %v1264
        %v1366 = vsel %vm709, %v1264, %v1266
        %v1367 = vsel %vm709, %v1268, %v1270
        %v1368 = vsel %vm709, %v1270, %v1272
        %v1369 = vsel %vm709, %v1274, %v1276
        %v1370 = vsel %vm709, %v1276, %v1278
        %v1371 = vsel %vm709, %v1280, %v1282
        %v1372 = vsel %vm709, %v1282, %v1284
        %v1373 = vsel %vm709, %v1286, %v1288
        %v1374 = vsel %vm709, %v1288, %v1290
        %v1375 = vsel %vm709, %v1292, %v1294
        %v1376 = vsel %vm709, %v1294, %v1296
        %v1377 = vsel %vm709, %v1298, %v1300
        %v1378 = vsel %vm709, %v1300, %v1302
        %v1379 = vsel %vm709, %v1304, %v1306
        %v1380 = vsel %vm709, %v1306, %v1308
        %v1453 = vsel %vm377, %v1078, 0
        %1455 = vmatpush.msra.mxu0 %v1339
        %1456 = vmatpush.msra.mxu0 %v1337
        %1457 = vmatpush.msra.mxu0 %v1335
        %1458 = vmatpush.msra.mxu0 %v1333
        %1459 = vmatpush.msra.mxu0 %v1331
        %1460 = vmatpush.msra.mxu0 %v1329
        %1461 = vmatpush.msra.mxu0 %v1327
        %1462 = vmatpush.msra.mxu0 %v1325
        %1463 = vmatpush.msra.mxu0 %v1323
        %1464 = vmatpush.msra.mxu0 %v1321
        %1465 = vmatpush.msra.mxu0 %v1319
        %1466 = vmatpush.msra.mxu0 %v1317
        %1467 = vmatpush.msra.mxu0 %v1315
        %1468 = vmatpush.msra.mxu0 %v1313
        %1469 = vmatpush.msra.mxu0 %v1311
        %1470 = vmatpush.msra.mxu0 %v1309
        %1471 = vmatmul.f32.gmra.mxu0 %v1076
        %v1472 = vpop.f32.mrf.mxu0
        %v1473 = vadd.f32 %v1072, %v1472
        %1474 = vdwg.mxu0
        %1475 = vmatpush.msra.mxu0 %v1371
        %1476 = vmatpush.msra.mxu0 %v1369
        %1477 = vmatpush.msra.mxu0 %v1367
        %1478 = vmatpush.msra.mxu0 %v1365
        %1479 = vmatpush.msra.mxu0 %v1363
        %1480 = vmatpush.msra.mxu0 %v1361
        %1481 = vmatpush.msra.mxu0 %v1359
        %1482 = vmatpush.msra.mxu0 %v1357
        %1483 = vmatpush.msra.mxu0 %v1355
        %1484 = vmatpush.msra.mxu0 %v1353
        %1485 = vmatpush.msra.mxu0 %v1351
        %1486 = vmatpush.msra.mxu0 %v1349
        %1487 = vmatpush.msra.mxu0 %v1347
        %1488 = vmatpush.msra.mxu0 %v1345
        %1489 = vmatpush.msra.mxu0 %v1343
        %1490 = vmatpush.msra.mxu0 %v1341
        %1491 = vmatmul.f32.gmra.mxu0 %v1077
        %v1492 = vpop.f32.mrf.mxu0
        %v1493 = vadd.f32 %v1473, %v1492
        %1494 = vdwg.mxu0
        %1495 = vmatpush.msra.mxu0 0.0
        %1496 = vmatpush.msra.mxu0 0.0
        %1497 = vmatpush.msra.mxu0 0.0
        %1498 = vmatpush.msra.mxu0 0.0
        %1499 = vmatpush.msra.mxu0 0.0
        %1500 = vmatpush.msra.mxu0 0.0
        %1501 = vmatpush.msra.mxu0 0.0
        %1502 = vmatpush.msra.mxu0 0.0
        %1503 = vmatpush.msra.mxu0 0.0
        %1504 = vmatpush.msra.mxu0 0.0
        %1505 = vmatpush.msra.mxu0 0.0
        %1506 = vmatpush.msra.mxu0 0.0
        %1507 = vmatpush.msra.mxu0 %v1379
        %1508 = vmatpush.msra.mxu0 %v1377
        %1509 = vmatpush.msra.mxu0 %v1375
        %1510 = vmatpush.msra.mxu0 %v1373
        %1511 = vmatmul.f32.gmra.mxu0 %v1453
        %v1512 = vpop.f32.mrf.mxu0
        %v1513 = vadd.f32 %v1493, %v1512
        %1514 = vdwg.mxu0
        %1515 = vmatpush.msra.mxu0 %v1340
        %1516 = vmatpush.msra.mxu0 %v1338
        %1517 = vmatpush.msra.mxu0 %v1336
        %1518 = vmatpush.msra.mxu0 %v1334
        %1519 = vmatpush.msra.mxu0 %v1332
        %1520 = vmatpush.msra.mxu0 %v1330
        %1521 = vmatpush.msra.mxu0 %v1328
        %1522 = vmatpush.msra.mxu0 %v1326
        %1523 = vmatpush.msra.mxu0 %v1324
        %1524 = vmatpush.msra.mxu0 %v1322
        %1525 = vmatpush.msra.mxu0 %v1320
        %1526 = vmatpush.msra.mxu0 %v1318
        %1527 = vmatpush.msra.mxu0 %v1316
        %1528 = vmatpush.msra.mxu0 %v1314
        %1529 = vmatpush.msra.mxu0 %v1312
        %1530 = vmatpush.msra.mxu0 %v1310
        %1531 = vmatmul.f32.gmra.mxu0 %v1076
        %v1532 = vpop.f32.mrf.mxu0
        %v1533 = vadd.f32 %v1072, %v1532
        %1534 = vdwg.mxu0
        %1535 = vmatpush.msra.mxu0 %v1372
        %1536 = vmatpush.msra.mxu0 %v1370
        %1537 = vmatpush.msra.mxu0 %v1368
        %1538 = vmatpush.msra.mxu0 %v1366
        %1539 = vmatpush.msra.mxu0 %v1364
        %1540 = vmatpush.msra.mxu0 %v1362
        %1541 = vmatpush.msra.mxu0 %v1360
        %1542 = vmatpush.msra.mxu0 %v1358
        %1543 = vmatpush.msra.mxu0 %v1356
        %1544 = vmatpush.msra.mxu0 %v1354
        %1545 = vmatpush.msra.mxu0 %v1352
        %1546 = vmatpush.msra.mxu0 %v1350
        %1547 = vmatpush.msra.mxu0 %v1348
        %1548 = vmatpush.msra.mxu0 %v1346
        %1549 = vmatpush.msra.mxu0 %v1344
        %1550 = vmatpush.msra.mxu0 %v1342
        %1551 = vmatmul.f32.gmra.mxu0 %v1077
        %v1552 = vpop.f32.mrf.mxu0
        %v1553 = vadd.f32 %v1533, %v1552
        %1554 = vdwg.mxu0
        %1555 = vmatpush.msra.mxu0 0.0
        %1556 = vmatpush.msra.mxu0 0.0
        %1557 = vmatpush.msra.mxu0 0.0
        %1558 = vmatpush.msra.mxu0 0.0
        %1559 = vmatpush.msra.mxu0 0.0
        %1560 = vmatpush.msra.mxu0 0.0
        %1561 = vmatpush.msra.mxu0 0.0
        %1562 = vmatpush.msra.mxu0 0.0
        %1563 = vmatpush.msra.mxu0 0.0
        %1564 = vmatpush.msra.mxu0 0.0
        %1565 = vmatpush.msra.mxu0 0.0
        %1566 = vmatpush.msra.mxu0 0.0
        %1567 = vmatpush.msra.mxu0 %v1380
        %1568 = vmatpush.msra.mxu0 %v1378
        %1569 = vmatpush.msra.mxu0 %v1376
        %1570 = vmatpush.msra.mxu0 %v1374
        %1571 = vmatmul.f32.gmra.mxu0 %v1453
        %v1572 = vpop.f32.mrf.mxu0
        %v1573 = vadd.f32 %v1553, %v1572
        %1574 = vdwg.mxu0
        %v1577 = vrot.slane %v1573, 6
        %vm1578 = vcmask 1041408
        %v1579 = vsel %vm1578, %v1513, %v1577
        %1581 = vst [vmem:[%s340] sm:$0xf] %v1579
        %s1582 = sand.u32 %s168, 1
        %s1583 = scalar_lea.sflag [#allocation5], %s1582
        %s1584 = sand.u32 %s168, 1
        %s1585 = smul.addr %s1584, 64
        %s1586 = scalar_lea.vmem [#allocation9], %s1585
        %s1587 = sand.u32 %s194, 1
        %s1588 = scalar_lea.sflag [#allocation11], %s1587
        %s1589 = sand.u32 %s194, 1
        %s1590 = smul.addr %s1589, 4
        %s1591 = scalar_lea.vmem [#allocation10], %s1590
        // Predicated region
        $region57: #{tpu_custom_call.1} parent=43 // pred_check
          %p1592 = pneg %p178
        $region58: #{tpu_custom_call.1} parent=43 // pred_check_branch
          %1594 = sbr.rel (%p1592) target = $region60
        $region59: #{tpu_custom_call.1} parent=43 // pred_region
          %1596 = vsyncadd %s1583, 0
          %s1597 = smul.addr %s29, 8
          %s1598 = smul.addr %s1597, 8
          %s1599 = scalar_lea.hbm %s6, %s1598
          %s1600 = sshll.u32 %s1586, 4
          %s1601 = int_to_ptr.vmem [resolvable:$true] %s1600
          %s1602 = sshll.u32 %s1599, 4
          %s1603 = int_to_ptr.hbm [resolvable:$true] %s1602
          %1608 = dma.vmem_to_hbm [thread:$0]  %s1601, 1024, %s1603, %s1583, 256, 256, 16
        $region60: #{tpu_custom_call.1} parent=43 // pred_fallthru
          _
        // Predicated region
        $region61: #{tpu_custom_call.1} parent=43 // pred_check
          %p1609 = pneg %p204
        $region62: #{tpu_custom_call.1} parent=43 // pred_check_branch
          %1611 = sbr.rel (%p1609) target = $region64
        $region63: #{tpu_custom_call.1} parent=43 // pred_region
          %1613 = vsyncadd %s1588, 0
          %s1614 = smul.addr %s29, 2
          %s1615 = smul.addr %s1614, 2
          %s1616 = scalar_lea.hbm %s7, %s1615
          %s1618 = sshll.u32 %s1591, 4
          %s1619 = int_to_ptr.vmem [resolvable:$true] %s1618
          %s1620 = sshll.u32 %s1616, 4
          %s1621 = int_to_ptr.hbm [resolvable:$true] %s1620
          %1623 = dma.vmem_to_hbm [thread:$0]  %s1619, 64, %s1621, %s1588
        $region64: #{tpu_custom_call.1} parent=43 // pred_fallthru
          _
      $region44: #{tpu_custom_call.1} parent=5 // pred_fallthru
        _
      %p1624 = scmp.le.s32.totalorder 2, %s24
      // Predicated region
      $region65: #{tpu_custom_call.1} parent=5 // pred_check
        %p1625 = pneg %p1624
      $region66: #{tpu_custom_call.1} parent=5 // pred_check_branch
        %1627 = sbr.rel (%p1625) target = $region68
      $region67: #{tpu_custom_call.1} parent=5 // pred_region
        %s1628 = ssub.s32 %s24, 2
        // Predicated region
        $region69: #{tpu_custom_call.1} parent=67 // pred_check
          %p1629 = pneg %p184
        $region70: #{tpu_custom_call.1} parent=67 // pred_check_branch
          %1631 = sbr.rel (%p1629) target = $region72
        $region71: #{tpu_custom_call.1} parent=67 // pred_region
          %s1632 = sand.u32 %s169, 1
          %s1633 = scalar_lea.sflag [#allocation5], %s1632
          %s1634 = sand.u32 %s169, 1
          %s1635 = smul.addr %s1634, 64
          %s1636 = scalar_lea.vmem [#allocation9], %s1635
          %1638 = dma.done %s1633, 1024
        $region72: #{tpu_custom_call.1} parent=67 // pred_fallthru
          _
        // Predicated region
        $region73: #{tpu_custom_call.1} parent=67 // pred_check
          %p1639 = pneg %p210
        $region74: #{tpu_custom_call.1} parent=67 // pred_check_branch
          %1641 = sbr.rel (%p1639) target = $region76
        $region75: #{tpu_custom_call.1} parent=67 // pred_region
          %s1642 = sand.u32 %s195, 1
          %s1643 = scalar_lea.sflag [#allocation11], %s1642
          %s1644 = sand.u32 %s195, 1
          %s1645 = smul.addr %s1644, 4
          %s1646 = scalar_lea.vmem [#allocation10], %s1645
          %1648 = dma.done %s1643, 64
        $region76: #{tpu_custom_call.1} parent=67 // pred_fallthru
          _
      $region68: #{tpu_custom_call.1} parent=5 // pred_fallthru
        _
    $region6: #{tpu_custom_call.1} parent=1 // loop_footer
      %s28 = sadd.s32 1, %s24
    $region7: #{tpu_custom_call.1} parent=1 // loop_footer_branch
      %23 = sbr.rel target = $region3
    $region8: #{tpu_custom_call.1} parent=1 // loop_exit
      _
    %1649 = vsyncpa [#allocation4], 1
    %s1650 = scalar_lea.sflag [#allocation4], 1
    %1651 = vsyncpa %s1650, 1
    %1652 = vsyncpa [#allocation7], 1
    %1653 = vsyncpa [#allocation5], 1
    %s1654 = scalar_lea.sflag [#allocation5], 1
    %1655 = vsyncpa %s1654, 1
    %1656 = vsyncpa [#allocation11], 1
    %s1657 = scalar_lea.sflag [#allocation11], 1
    %1658 = vsyncpa %s1657, 1

</llo_original>
